<compile_context>
chip_gen: v6e
topology: v6e:2x2x1
jax: 0.10.0
libtpu: 0.0.40
codegen_flags: <defaults>
</compile_context>

<pallas_src>
import numpy as np
import jax
import jax.numpy as jnp
from jax import lax
from jax.experimental import pallas as pl
from jax.experimental.pallas import tpu as pltpu

START_TAG, STOP_TAG = "<START>", "<STOP>"
tag_to_ix = {"B": 0, "I": 1, "O": 2, START_TAG: 3, STOP_TAG: 4}
TAGSET = len(tag_to_ix)          # 5
START_IDX = tag_to_ix[START_TAG]
STOP_IDX = tag_to_ix[STOP_TAG]


def make_params(key, vocab_size, embedding_dim, hidden_dim):
    H = hidden_dim // 2
    ks = jax.random.split(key, 14)

    def unif(k, shape, scale):
        return jax.random.uniform(k, shape, jnp.float32, -scale, scale)

    s = 1.0 / np.sqrt(H)
    st = 1.0 / np.sqrt(hidden_dim)
    return dict(
        emb=jax.random.normal(ks[0], (vocab_size, embedding_dim), jnp.float32),
        w_ih_f=unif(ks[1], (4 * H, embedding_dim), s),
        w_hh_f=unif(ks[2], (4 * H, H), s),
        b_ih_f=unif(ks[3], (4 * H,), s),
        b_hh_f=unif(ks[4], (4 * H,), s),
        w_ih_b=unif(ks[5], (4 * H, embedding_dim), s),
        w_hh_b=unif(ks[6], (4 * H, H), s),
        b_ih_b=unif(ks[7], (4 * H,), s),
        b_hh_b=unif(ks[8], (4 * H,), s),
        w_tag=unif(ks[9], (TAGSET, hidden_dim), st),
        b_tag=unif(ks[10], (TAGSET,), st),
        transitions=jax.random.normal(ks[11], (TAGSET, TAGSET), jnp.float32),
        h0=jax.random.normal(ks[12], (2, 1, H), jnp.float32),
        c0=jax.random.normal(ks[13], (2, 1, H), jnp.float32),
    )


def pack_params(params, vocab_size, embedding_dim, hidden_dim):
    """One-time host-side parameter fusion into a single (R, 8H) f32 slab."""
    p = {k: np.asarray(v, np.float32) for k, v in params.items()}
    H = hidden_dim // 2
    E = embedding_dim
    V = vocab_size
    LW = 8 * H                                    # slab lane width (128 for hidden_dim=32)

    def fuse_gates(wf, wb):
        # block-diagonal (in_f+in_b, 8H); per-gate column layout [g_fwd | g_bwd]
        in_f, in_b = wf.shape[0], wb.shape[0]
        out = np.zeros((in_f + in_b, 8 * H), np.float32)
        for g in range(4):
            out[:in_f, (2 * g) * H:(2 * g + 1) * H] = wf[:, g * H:(g + 1) * H]
            out[in_f:, (2 * g + 1) * H:(2 * g + 2) * H] = wb[:, g * H:(g + 1) * H]
        return out

    wih = fuse_gates(p["w_ih_f"].T, p["w_ih_b"].T)        # (2E, 8H)
    whh = fuse_gates(p["w_hh_f"].T, p["w_hh_b"].T)        # (2H, 8H)

    b = np.zeros((1, 8 * H), np.float32)
    b_f = p["b_ih_f"] + p["b_hh_f"]
    b_b = p["b_ih_b"] + p["b_hh_b"]
    for g in range(4):
        b[0, (2 * g) * H:(2 * g + 1) * H] = b_f[g * H:(g + 1) * H]
        b[0, (2 * g + 1) * H:(2 * g + 2) * H] = b_b[g * H:(g + 1) * H]

    # Fold the 0.5 pre-scale of the sigmoid gates (i, f, o) into weights/bias so the
    # kernel needs ONE full-width tanh per step:  sigmoid(x) = 0.5*tanh(x/2) + 0.5.
    scale = np.full((8 * H,), 0.5, np.float32)
    scale[4 * H:6 * H] = 1.0                              # g-gate (tanh) columns unscaled
    wih *= scale[None, :]
    whh *= scale[None, :]
    b *= scale[None, :]

    # Fuse the embedding table into the input projection:
    #   x2 @ wih == onehot2 @ W   with   W = blockdiag(emb, emb) @ wih   (2V, 8H)
    emb2 = np.zeros((2 * V, 2 * E), np.float32)
    emb2[:V, :E] = p["emb"]
    emb2[V:, E:] = p["emb"]
    W = emb2 @ wih                                        # (2V, 8H)

    # fused initial state row: [h0_f | h0_b | c0_f | c0_b | 0...]
    hc = np.zeros((1, LW), np.float32)
    hc[0, 0:H] = p["h0"][0, 0]
    hc[0, H:2 * H] = p["h0"][1, 0]
    hc[0, 2 * H:3 * H] = p["c0"][0, 0]
    hc[0, 3 * H:4 * H] = p["c0"][1, 0]

    # block-diagonal hidden2tag: fwd-hidden -> cols [0,TS), bwd-hidden -> cols [TS,2TS)
    wtag_t = p["w_tag"].T                                 # (2H, TS)
    wtag2 = np.zeros((2 * H, LW), np.float32)
    wtag2[:H, 0:TAGSET] = wtag_t[:H, :]
    wtag2[H:, TAGSET:2 * TAGSET] = wtag_t[H:, :]

    btag = np.zeros((1, LW), np.float32)
    btag[0, :TAGSET] = p["b_tag"]
    trans = np.zeros((TAGSET, LW), np.float32)
    trans[:, :TAGSET] = p["transitions"]

    def pad8(n):
        return -(-n // 8) * 8

    R_W = 0
    R_WHH = R_W + pad8(2 * V)
    R_WTAG = R_WHH + pad8(2 * H)
    R_TRANS = R_WTAG + pad8(2 * H)
    R_VEC = R_TRANS + pad8(TAGSET)
    R_TOT = R_VEC + 8

    slab = np.zeros((R_TOT, LW), np.float32)
    slab[R_W:R_W + 2 * V, :] = W
    slab[R_WHH:R_WHH + 2 * H, :] = whh
    slab[R_WTAG:R_WTAG + 2 * H, :] = wtag2
    slab[R_TRANS:R_TRANS + TAGSET, :] = trans
    slab[R_VEC + 0] = b[0]
    slab[R_VEC + 1] = hc[0]
    slab[R_VEC + 2] = btag[0]

    offs = dict(R_W=R_W, R_WHH=R_WHH, R_WTAG=R_WTAG, R_TRANS=R_TRANS, R_VEC=R_VEC)
    return jnp.asarray(slab), offs


def build_bilstm_crf(params, vocab_size, embedding_dim, hidden_dim, seq_len):
    slab, offs = pack_params(params, vocab_size, embedding_dim, hidden_dim)
    H = hidden_dim // 2
    H2 = 2 * H
    H8 = 8 * H
    V = vocab_size
    V2 = 2 * V
    T = seq_len
    TS = TAGSET
    OUT_W = 128
    R_W, R_WHH, R_WTAG, R_TRANS, R_VEC = (
        offs["R_W"], offs["R_WHH"], offs["R_WTAG"], offs["R_TRANS"], offs["R_VEC"])

    def kernel(sent_ref, slab_ref, out_ref, hraw_ref):
        f32 = jnp.float32

        # ---- loop-invariant loads / constants (all hoisted) ----
        W = slab_ref[R_W:R_W + V2, :]                    # (2V, 8H) fused emb + input proj
        whh = slab_ref[R_WHH:R_WHH + H2, :]              # (2H, 8H) block-diag recurrent
        wtag2 = slab_ref[R_WTAG:R_WTAG + H2, :]          # (2H, LW) block-diag hidden2tag
        trans = slab_ref[R_TRANS:R_TRANS + TS, 0:TS]     # (TS, TS) transitions[next, prev]
        b = slab_ref[R_VEC + 0:R_VEC + 1, :]             # (1, 8H) fused, pre-scaled bias
        hc0 = slab_ref[R_VEC + 1:R_VEC + 2, :]           # (1, 8H) [h0 | c0]
        btag = slab_ref[R_VEC + 2:R_VEC + 3, 0:TS]       # (1, TS)

        lane8h = lax.broadcasted_iota(jnp.int32, (1, H8), 1)
        is_g = (lane8h >= 2 * H2) & (lane8h < 3 * H2)    # tanh-gate lanes
        alpha = jnp.where(is_g, f32(1.0), f32(0.5))
        beta = jnp.where(is_g, f32(0.0), f32(0.5))

        # ---- in-kernel embedding gather as a one-hot matmul (fwd | time-reversed) ----
        sub_col = lax.broadcasted_iota(jnp.int32, (T, 1), 0)
        idf = jnp.zeros((T, 1), jnp.int32)
        idb = jnp.zeros((T, 1), jnp.int32)
        for t in range(T):
            s = sent_ref[t]                              # scalar read from SMEM
            idf = jnp.where(sub_col == t, s, idf)
            idb = jnp.where(sub_col == (T - 1 - t), s, idb)
        lane2v = lax.broadcasted_iota(jnp.int32, (T, V2), 1)
        onehot = ((lane2v == idf) | (lane2v == (idb + V))).astype(f32)   # (T, 2V)

        # ---- input projection hoisted out of the recurrence (one matmul) ----
        gates_pre = jnp.dot(onehot, W, preferred_element_type=f32) + b   # (T, 8H)

        # ---- fused bidirectional LSTM recurrence (T static, fully unrolled) ----
        h = hc0[:, 0:H2]                                 # (1, 2H)
        c = hc0[:, H2:2 * H2]                            # (1, 2H)
        for t in range(T):
            g = gates_pre[t:t + 1, :] + jnp.dot(h, whh, preferred_element_type=f32)
            a = alpha * jnp.tanh(g) + beta               # one full-width EUP op / step
            i_g = a[:, 0:H2]
            f_g = a[:, H2:2 * H2]
            g_g = a[:, 2 * H2:3 * H2]
            o_g = a[:, 3 * H2:4 * H2]
            c = f_g * c + i_g * g_g
            h = o_g * jnp.tanh(c)
            hraw_ref[t:t + 1, :] = h                     # single (1,2H) store per step

        # ---- hidden2tag via block-diag weights; bwd time-reversal by static indexing ----
        A = jnp.dot(hraw_ref[...], wtag2, preferred_element_type=f32)    # (T, LW)

        # ---- Viterbi forward pass (fully unrolled) ----
        NEG = f32(-10000.0)
        BIGF = f32(1e9)
        lane_ts = lax.broadcasted_iota(jnp.int32, (1, TS), 1)
        col_iota = lax.broadcasted_iota(jnp.int32, (TS, TS), 1).astype(f32)
        eye = (lax.broadcasted_iota(jnp.int32, (TS, TS), 0)
               == lax.broadcasted_iota(jnp.int32, (TS, TS), 1))

        fv = jnp.where(lane_ts == START_IDX, f32(0.0), NEG)              # (1, TS)
        bps = []
        for t in range(T):
            feat_t = A[t:t + 1, 0:TS] + A[T - 1 - t:T - t, TS:2 * TS] + btag
            M = trans + fv                               # M[next, prev]
            vmax_col = jnp.max(M, axis=1, keepdims=True)                 # (TS, 1)
            bptr_col = jnp.min(jnp.where(M == vmax_col, col_iota, BIGF),
                               axis=1, keepdims=True)    # first argmax
            vmax_row = jnp.sum(jnp.where(eye, vmax_col, f32(0.0)),
                               axis=0, keepdims=True)    # col -> row, no transpose
            bptr_row = jnp.sum(jnp.where(eye, bptr_col, f32(0.0)),
                               axis=0, keepdims=True).astype(jnp.int32)
            bps.append(bptr_row)
            fv = vmax_row + feat_t

        term = fv + trans[STOP_IDX:STOP_IDX + 1, :]                      # (1, TS)
        best_score = jnp.max(term, axis=1, keepdims=True)                # (1, 1)
        best_tag = jnp.min(jnp.where(term == best_score,
                                     lane_ts.astype(f32), BIGF),
                           axis=1, keepdims=True).astype(jnp.int32)      # (1, 1)

        # ---- backtrace into one lane-dense output row: lane0 = score, lanes 1..T = path ----
        # TODO(synk): PyTorch's `assert start == START_TAG` sanity check is not reproduced in-kernel.
        lane_out = lax.broadcasted_iota(jnp.int32, (1, OUT_W), 1)
        out = jnp.where(lane_out == 0, best_score, f32(0.0))
        cur = best_tag
        out = jnp.where(lane_out == T, cur.astype(f32), out)             # path[T-1] at lane T
        for t in range(T - 1, 0, -1):
            cur = jnp.sum(jnp.where(lane_ts == cur, bps[t], 0),
                          axis=1, keepdims=True)                         # bp[t][path[t]]
            out = jnp.where(lane_out == t, cur.astype(f32), out)         # path[t-1] at lane t
        out_ref[...] = out

    fwd_call = pl.pallas_call(
        kernel,
        out_shape=jax.ShapeDtypeStruct((1, OUT_W), jnp.float32),
        in_specs=[pl.BlockSpec(memory_space=pltpu.MemorySpace.SMEM),   # sentence ids
                  pl.BlockSpec(memory_space=pltpu.MemorySpace.VMEM)],  # packed param slab
        out_specs=pl.BlockSpec(memory_space=pltpu.MemorySpace.VMEM),
        scratch_shapes=[pltpu.VMEM((T, H2), jnp.float32)],             # fused hidden states
    )

    @jax.jit
    def forward(sentence):
        out = fwd_call(sentence, slab)
        return out[0, 0], out[0, 1:1 + T].astype(jnp.int32)

    return forward


def reference_forward(sentence, params, hidden_dim):
    p = {k: np.asarray(v) for k, v in params.items()}
    H = hidden_dim // 2
    T = len(sentence)
    embeds = p["emb"][np.asarray(sentence)]

    def sigmoid(x):
        return 1.0 / (1.0 + np.exp(-x))

    def run_dir(wih, whh, bih, bhh, h0, c0, reverse):
        h, c = h0.copy(), c0.copy()
        hs = np.zeros((T, H), np.float32)
        order = range(T - 1, -1, -1) if reverse else range(T)
        for t in order:
            x = embeds[t:t + 1]
            g = x @ wih.T + bih + h @ whh.T + bhh
            i = sigmoid(g[:, :H]); f = sigmoid(g[:, H:2 * H])
            gg = np.tanh(g[:, 2 * H:3 * H]); o = sigmoid(g[:, 3 * H:])
            c = f * c + i * gg
            h = o * np.tanh(c)
            hs[t] = h
        return hs

    hf = run_dir(p["w_ih_f"], p["w_hh_f"], p["b_ih_f"], p["b_hh_f"],
                 p["h0"][0], p["c0"][0], False)
    hb = run_dir(p["w_ih_b"], p["w_hh_b"], p["b_ih_b"], p["b_hh_b"],
                 p["h0"][1], p["c0"][1], True)
    feats = np.concatenate([hf, hb], axis=1) @ p["w_tag"].T + p["b_tag"]

    trans = p["transitions"]
    fv = np.full((TAGSET,), -10000.0, np.float32); fv[START_IDX] = 0.0
    backptrs = []
    for t in range(T):
        M = trans + fv[None, :]
        backptrs.append(M.argmax(axis=1))
        fv = M.max(axis=1) + feats[t]
    term = fv + trans[STOP_IDX]
    best = int(term.argmax())
    score = float(term[best])
    path = [best]
    for bptrs in reversed(backptrs):
        best = int(bptrs[best])
        path.append(best)
    start = path.pop()
    assert start == START_IDX
    path.reverse()
    return score, np.array(path, np.int32)


if __name__ == "__main__":
    vocab_size, embedding_dim, hidden_dim, T = 20, 16, 32, 8
    key = jax.random.PRNGKey(0)
    kp, ks = jax.random.split(key)
    params = make_params(kp, vocab_size, embedding_dim, hidden_dim)
    sentence = jax.random.randint(ks, (T,), 0, vocab_size, jnp.int32)

    forward = build_bilstm_crf(params, vocab_size, embedding_dim, hidden_dim, T)
    score, path = forward(sentence)
    score = jax.block_until_ready(score)
    path = jax.block_until_ready(path)

    ref_score, ref_path = reference_forward(np.asarray(sentence), params, hidden_dim)
    assert np.allclose(float(score), ref_score, atol=1e-3, rtol=1e-4), (float(score), ref_score)
    assert np.array_equal(np.asarray(path), ref_path), (np.asarray(path), ref_path)
    print("KERNEL_OK")
</pallas_src>

<mosaic_0001>
module attributes {stable_mosaic.version = 11 : i64} {
  func.func @kernel(%arg0: memref<8xi32, #tpu.memory_space<smem>>, %arg1: memref<120x128xf32, #tpu.memory_space<vmem>>, %arg2: memref<1x128xf32, #tpu.memory_space<vmem>>, %arg3: memref<8x32xf32, #tpu.memory_space<vmem>>) attributes {dimension_semantics = [], scalar_prefetch = 0 : i64, scratch_operands = 1 : i64, tpu.core_type = #tpu.core_type<tc>} {
    %c0 = arith.constant 0 : index
    %c0_0 = arith.constant 0 : index
    %0 = vector.load %arg1[%c0, %c0_0] : memref<120x128xf32, #tpu.memory_space<vmem>>, vector<40x128xf32>
    %c40 = arith.constant 40 : index
    %c0_1 = arith.constant 0 : index
    %1 = vector.load %arg1[%c40, %c0_1] : memref<120x128xf32, #tpu.memory_space<vmem>>, vector<32x128xf32>
    %c72 = arith.constant 72 : index
    %c0_2 = arith.constant 0 : index
    %2 = vector.load %arg1[%c72, %c0_2] : memref<120x128xf32, #tpu.memory_space<vmem>>, vector<32x128xf32>
    %c104 = arith.constant 104 : index
    %c0_3 = arith.constant 0 : index
    %3 = vector.load %arg1[%c104, %c0_3] : memref<120x128xf32, #tpu.memory_space<vmem>>, vector<5x5xf32>
    %c112 = arith.constant 112 : index
    %c0_4 = arith.constant 0 : index
    %4 = vector.load %arg1[%c112, %c0_4] : memref<120x128xf32, #tpu.memory_space<vmem>>, vector<1x128xf32>
    %c113 = arith.constant 113 : index
    %c0_5 = arith.constant 0 : index
    %5 = vector.load %arg1[%c113, %c0_5] : memref<120x128xf32, #tpu.memory_space<vmem>>, vector<1x128xf32>
    %c114 = arith.constant 114 : index
    %c0_6 = arith.constant 0 : index
    %6 = vector.load %arg1[%c114, %c0_6] : memref<120x128xf32, #tpu.memory_space<vmem>>, vector<1x5xf32>
    %7 = tpu.iota {dimensions = array<i32: 1>} : vector<1x128xi32>
    %c64_i32 = arith.constant 64 : i32
    %8 = vector.broadcast %c64_i32 : i32 to vector<1x128xi32>
    %9 = arith.cmpi sge, %7, %8 : vector<1x128xi32>
    %c96_i32 = arith.constant 96 : i32
    %10 = vector.broadcast %c96_i32 : i32 to vector<1x128xi32>
    %11 = arith.cmpi slt, %7, %10 : vector<1x128xi32>
    %12 = arith.andi %9, %11 : vector<1x128xi1>
    %cst = arith.constant 1.000000e+00 : f32
    %cst_7 = arith.constant 5.000000e-01 : f32
    %13 = vector.broadcast %cst : f32 to vector<1x128xf32>
    %14 = vector.broadcast %cst_7 : f32 to vector<1x128xf32>
    %15 = arith.select %12, %13, %14 : vector<1x128xi1>, vector<1x128xf32>
    %cst_8 = arith.constant 0.000000e+00 : f32
    %cst_9 = arith.constant 5.000000e-01 : f32
    %16 = vector.broadcast %cst_8 : f32 to vector<1x128xf32>
    %17 = vector.broadcast %cst_9 : f32 to vector<1x128xf32>
    %18 = arith.select %12, %16, %17 : vector<1x128xi1>, vector<1x128xf32>
    %19 = tpu.iota {dimensions = array<i32: 0>} : vector<8x1xi32>
    %c0_i32 = arith.constant 0 : i32
    %20 = vector.broadcast %c0_i32 : i32 to vector<8x1xi32>
    %c0_i32_10 = arith.constant 0 : i32
    %21 = vector.broadcast %c0_i32_10 : i32 to vector<8x1xi32>
    %c0_11 = arith.constant 0 : index
    %22 = memref.load %arg0[%c0_11] : memref<8xi32, #tpu.memory_space<smem>>
    %c0_i32_12 = arith.constant 0 : i32
    %23 = vector.broadcast %c0_i32_12 : i32 to vector<8x1xi32>
    %24 = arith.cmpi eq, %19, %23 : vector<8x1xi32>
    %25 = vector.broadcast %22 : i32 to vector<8x1xi32>
    %26 = arith.select %24, %25, %20 : vector<8x1xi1>, vector<8x1xi32>
    %c7_i32 = arith.constant 7 : i32
    %27 = vector.broadcast %c7_i32 : i32 to vector<8x1xi32>
    %28 = arith.cmpi eq, %19, %27 : vector<8x1xi32>
    %29 = vector.broadcast %22 : i32 to vector<8x1xi32>
    %30 = arith.select %28, %29, %21 : vector<8x1xi1>, vector<8x1xi32>
    %c1 = arith.constant 1 : index
    %31 = memref.load %arg0[%c1] : memref<8xi32, #tpu.memory_space<smem>>
    %c1_i32 = arith.constant 1 : i32
    %32 = vector.broadcast %c1_i32 : i32 to vector<8x1xi32>
    %33 = arith.cmpi eq, %19, %32 : vector<8x1xi32>
    %34 = vector.broadcast %31 : i32 to vector<8x1xi32>
    %35 = arith.select %33, %34, %26 : vector<8x1xi1>, vector<8x1xi32>
    %c6_i32 = arith.constant 6 : i32
    %36 = vector.broadcast %c6_i32 : i32 to vector<8x1xi32>
    %37 = arith.cmpi eq, %19, %36 : vector<8x1xi32>
    %38 = vector.broadcast %31 : i32 to vector<8x1xi32>
    %39 = arith.select %37, %38, %30 : vector<8x1xi1>, vector<8x1xi32>
    %c2 = arith.constant 2 : index
    %40 = memref.load %arg0[%c2] : memref<8xi32, #tpu.memory_space<smem>>
    %c2_i32 = arith.constant 2 : i32
    %41 = vector.broadcast %c2_i32 : i32 to vector<8x1xi32>
    %42 = arith.cmpi eq, %19, %41 : vector<8x1xi32>
    %43 = vector.broadcast %40 : i32 to vector<8x1xi32>
    %44 = arith.select %42, %43, %35 : vector<8x1xi1>, vector<8x1xi32>
    %c5_i32 = arith.constant 5 : i32
    %45 = vector.broadcast %c5_i32 : i32 to vector<8x1xi32>
    %46 = arith.cmpi eq, %19, %45 : vector<8x1xi32>
    %47 = vector.broadcast %40 : i32 to vector<8x1xi32>
    %48 = arith.select %46, %47, %39 : vector<8x1xi1>, vector<8x1xi32>
    %c3 = arith.constant 3 : index
    %49 = memref.load %arg0[%c3] : memref<8xi32, #tpu.memory_space<smem>>
    %c3_i32 = arith.constant 3 : i32
    %50 = vector.broadcast %c3_i32 : i32 to vector<8x1xi32>
    %51 = arith.cmpi eq, %19, %50 : vector<8x1xi32>
    %52 = vector.broadcast %49 : i32 to vector<8x1xi32>
    %53 = arith.select %51, %52, %44 : vector<8x1xi1>, vector<8x1xi32>
    %c4_i32 = arith.constant 4 : i32
    %54 = vector.broadcast %c4_i32 : i32 to vector<8x1xi32>
    %55 = arith.cmpi eq, %19, %54 : vector<8x1xi32>
    %56 = vector.broadcast %49 : i32 to vector<8x1xi32>
    %57 = arith.select %55, %56, %48 : vector<8x1xi1>, vector<8x1xi32>
    %c4 = arith.constant 4 : index
    %58 = memref.load %arg0[%c4] : memref<8xi32, #tpu.memory_space<smem>>
    %c4_i32_13 = arith.constant 4 : i32
    %59 = vector.broadcast %c4_i32_13 : i32 to vector<8x1xi32>
    %60 = arith.cmpi eq, %19, %59 : vector<8x1xi32>
    %61 = vector.broadcast %58 : i32 to vector<8x1xi32>
    %62 = arith.select %60, %61, %53 : vector<8x1xi1>, vector<8x1xi32>
    %c3_i32_14 = arith.constant 3 : i32
    %63 = vector.broadcast %c3_i32_14 : i32 to vector<8x1xi32>
    %64 = arith.cmpi eq, %19, %63 : vector<8x1xi32>
    %65 = vector.broadcast %58 : i32 to vector<8x1xi32>
    %66 = arith.select %64, %65, %57 : vector<8x1xi1>, vector<8x1xi32>
    %c5 = arith.constant 5 : index
    %67 = memref.load %arg0[%c5] : memref<8xi32, #tpu.memory_space<smem>>
    %c5_i32_15 = arith.constant 5 : i32
    %68 = vector.broadcast %c5_i32_15 : i32 to vector<8x1xi32>
    %69 = arith.cmpi eq, %19, %68 : vector<8x1xi32>
    %70 = vector.broadcast %67 : i32 to vector<8x1xi32>
    %71 = arith.select %69, %70, %62 : vector<8x1xi1>, vector<8x1xi32>
    %c2_i32_16 = arith.constant 2 : i32
    %72 = vector.broadcast %c2_i32_16 : i32 to vector<8x1xi32>
    %73 = arith.cmpi eq, %19, %72 : vector<8x1xi32>
    %74 = vector.broadcast %67 : i32 to vector<8x1xi32>
    %75 = arith.select %73, %74, %66 : vector<8x1xi1>, vector<8x1xi32>
    %c6 = arith.constant 6 : index
    %76 = memref.load %arg0[%c6] : memref<8xi32, #tpu.memory_space<smem>>
    %c6_i32_17 = arith.constant 6 : i32
    %77 = vector.broadcast %c6_i32_17 : i32 to vector<8x1xi32>
    %78 = arith.cmpi eq, %19, %77 : vector<8x1xi32>
    %79 = vector.broadcast %76 : i32 to vector<8x1xi32>
    %80 = arith.select %78, %79, %71 : vector<8x1xi1>, vector<8x1xi32>
    %c1_i32_18 = arith.constant 1 : i32
    %81 = vector.broadcast %c1_i32_18 : i32 to vector<8x1xi32>
    %82 = arith.cmpi eq, %19, %81 : vector<8x1xi32>
    %83 = vector.broadcast %76 : i32 to vector<8x1xi32>
    %84 = arith.select %82, %83, %75 : vector<8x1xi1>, vector<8x1xi32>
    %c7 = arith.constant 7 : index
    %85 = memref.load %arg0[%c7] : memref<8xi32, #tpu.memory_space<smem>>
    %c7_i32_19 = arith.constant 7 : i32
    %86 = vector.broadcast %c7_i32_19 : i32 to vector<8x1xi32>
    %87 = arith.cmpi eq, %19, %86 : vector<8x1xi32>
    %88 = vector.broadcast %85 : i32 to vector<8x1xi32>
    %89 = arith.select %87, %88, %80 : vector<8x1xi1>, vector<8x1xi32>
    %c0_i32_20 = arith.constant 0 : i32
    %90 = vector.broadcast %c0_i32_20 : i32 to vector<8x1xi32>
    %91 = arith.cmpi eq, %19, %90 : vector<8x1xi32>
    %92 = vector.broadcast %85 : i32 to vector<8x1xi32>
    %93 = arith.select %91, %92, %84 : vector<8x1xi1>, vector<8x1xi32>
    %94 = tpu.iota {dimensions = array<i32: 1>} : vector<8x40xi32>
    %95 = vector.broadcast %89 : vector<8x1xi32> to vector<8x40xi32>
    %96 = arith.cmpi eq, %94, %95 : vector<8x40xi32>
    %c20_i32 = arith.constant 20 : i32
    %97 = vector.broadcast %c20_i32 : i32 to vector<8x1xi32>
    %98 = arith.addi %93, %97 : vector<8x1xi32>
    %99 = vector.broadcast %98 : vector<8x1xi32> to vector<8x40xi32>
    %100 = arith.cmpi eq, %94, %99 : vector<8x40xi32>
    %101 = arith.ori %96, %100 : vector<8x40xi1>
    %102 = arith.extui %101 : vector<8x40xi1> to vector<8x40xi32>
    %103 = arith.sitofp %102 : vector<8x40xi32> to vector<8x40xf32>
    %cst_21 = arith.constant dense<0.000000e+00> : vector<8x128xf32>
    %104 = tpu.matmul %103, %0, %cst_21 {dimension_numbers = #tpu.dot_dimension_numbers<[1], [0], [0], [1], [0, 0, 1, 1], [], []>} : vector<8x40xf32>, vector<40x128xf32>, vector<8x128xf32> -> vector<8x128xf32>
    %105 = vector.broadcast %4 : vector<1x128xf32> to vector<8x128xf32>
    %106 = arith.addf %104, %105 : vector<8x128xf32>
    %107 = vector.extract_strided_slice %5 {offsets = [0, 0], sizes = [1, 32], strides = [1, 1]} : vector<1x128xf32> to vector<1x32xf32>
    %108 = vector.extract_strided_slice %5 {offsets = [0, 32], sizes = [1, 32], strides = [1, 1]} : vector<1x128xf32> to vector<1x32xf32>
    %109 = vector.extract_strided_slice %106 {offsets = [0, 0], sizes = [1, 128], strides = [1, 1]} : vector<8x128xf32> to vector<1x128xf32>
    %cst_22 = arith.constant dense<0.000000e+00> : vector<1x128xf32>
    %110 = tpu.matmul %107, %1, %cst_22 {dimension_numbers = #tpu.dot_dimension_numbers<[1], [0], [0], [1], [0, 0, 1, 1], [], []>} : vector<1x32xf32>, vector<32x128xf32>, vector<1x128xf32> -> vector<1x128xf32>
    %111 = arith.addf %109, %110 : vector<1x128xf32>
    %112 = math.tanh %111 : vector<1x128xf32>
    %113 = arith.mulf %15, %112 : vector<1x128xf32>
    %114 = arith.addf %113, %18 : vector<1x128xf32>
    %115 = vector.extract_strided_slice %114 {offsets = [0, 0], sizes = [1, 32], strides = [1, 1]} : vector<1x128xf32> to vector<1x32xf32>
    %116 = vector.extract_strided_slice %114 {offsets = [0, 32], sizes = [1, 32], strides = [1, 1]} : vector<1x128xf32> to vector<1x32xf32>
    %117 = vector.extract_strided_slice %114 {offsets = [0, 64], sizes = [1, 32], strides = [1, 1]} : vector<1x128xf32> to vector<1x32xf32>
    %118 = vector.extract_strided_slice %114 {offsets = [0, 96], sizes = [1, 32], strides = [1, 1]} : vector<1x128xf32> to vector<1x32xf32>
    %119 = arith.mulf %116, %108 : vector<1x32xf32>
    %120 = arith.mulf %115, %117 : vector<1x32xf32>
    %121 = arith.addf %119, %120 : vector<1x32xf32>
    %122 = math.tanh %121 : vector<1x32xf32>
    %123 = arith.mulf %118, %122 : vector<1x32xf32>
    %c0_23 = arith.constant 0 : index
    %c0_24 = arith.constant 0 : index
    %124 = vector.load %arg3[%c0_23, %c0_24] : memref<8x32xf32, #tpu.memory_space<vmem>>, vector<1x32xf32>
    tpu.vector_store %arg3[%c0_23, %c0_24], %123 {strides = array<i32>} : memref<8x32xf32, #tpu.memory_space<vmem>>, vector<1x32xf32>,
    %125 = vector.extract_strided_slice %106 {offsets = [1, 0], sizes = [1, 128], strides = [1, 1]} : vector<8x128xf32> to vector<1x128xf32>
    %cst_25 = arith.constant dense<0.000000e+00> : vector<1x128xf32>
    %126 = tpu.matmul %123, %1, %cst_25 {dimension_numbers = #tpu.dot_dimension_numbers<[1], [0], [0], [1], [0, 0, 1, 1], [], []>} : vector<1x32xf32>, vector<32x128xf32>, vector<1x128xf32> -> vector<1x128xf32>
    %127 = arith.addf %125, %126 : vector<1x128xf32>
    %128 = math.tanh %127 : vector<1x128xf32>
    %129 = arith.mulf %15, %128 : vector<1x128xf32>
    %130 = arith.addf %129, %18 : vector<1x128xf32>
    %131 = vector.extract_strided_slice %130 {offsets = [0, 0], sizes = [1, 32], strides = [1, 1]} : vector<1x128xf32> to vector<1x32xf32>
    %132 = vector.extract_strided_slice %130 {offsets = [0, 32], sizes = [1, 32], strides = [1, 1]} : vector<1x128xf32> to vector<1x32xf32>
    %133 = vector.extract_strided_slice %130 {offsets = [0, 64], sizes = [1, 32], strides = [1, 1]} : vector<1x128xf32> to vector<1x32xf32>
    %134 = vector.extract_strided_slice %130 {offsets = [0, 96], sizes = [1, 32], strides = [1, 1]} : vector<1x128xf32> to vector<1x32xf32>
    %135 = arith.mulf %132, %121 : vector<1x32xf32>
    %136 = arith.mulf %131, %133 : vector<1x32xf32>
    %137 = arith.addf %135, %136 : vector<1x32xf32>
    %138 = math.tanh %137 : vector<1x32xf32>
    %139 = arith.mulf %134, %138 : vector<1x32xf32>
    %c1_26 = arith.constant 1 : index
    %c0_27 = arith.constant 0 : index
    %140 = vector.load %arg3[%c1_26, %c0_27] : memref<8x32xf32, #tpu.memory_space<vmem>>, vector<1x32xf32>
    tpu.vector_store %arg3[%c1_26, %c0_27], %139 {strides = array<i32>} : memref<8x32xf32, #tpu.memory_space<vmem>>, vector<1x32xf32>,
    %141 = vector.extract_strided_slice %106 {offsets = [2, 0], sizes = [1, 128], strides = [1, 1]} : vector<8x128xf32> to vector<1x128xf32>
    %cst_28 = arith.constant dense<0.000000e+00> : vector<1x128xf32>
    %142 = tpu.matmul %139, %1, %cst_28 {dimension_numbers = #tpu.dot_dimension_numbers<[1], [0], [0], [1], [0, 0, 1, 1], [], []>} : vector<1x32xf32>, vector<32x128xf32>, vector<1x128xf32> -> vector<1x128xf32>
    %143 = arith.addf %141, %142 : vector<1x128xf32>
    %144 = math.tanh %143 : vector<1x128xf32>
    %145 = arith.mulf %15, %144 : vector<1x128xf32>
    %146 = arith.addf %145, %18 : vector<1x128xf32>
    %147 = vector.extract_strided_slice %146 {offsets = [0, 0], sizes = [1, 32], strides = [1, 1]} : vector<1x128xf32> to vector<1x32xf32>
    %148 = vector.extract_strided_slice %146 {offsets = [0, 32], sizes = [1, 32], strides = [1, 1]} : vector<1x128xf32> to vector<1x32xf32>
    %149 = vector.extract_strided_slice %146 {offsets = [0, 64], sizes = [1, 32], strides = [1, 1]} : vector<1x128xf32> to vector<1x32xf32>
    %150 = vector.extract_strided_slice %146 {offsets = [0, 96], sizes = [1, 32], strides = [1, 1]} : vector<1x128xf32> to vector<1x32xf32>
    %151 = arith.mulf %148, %137 : vector<1x32xf32>
    %152 = arith.mulf %147, %149 : vector<1x32xf32>
    %153 = arith.addf %151, %152 : vector<1x32xf32>
    %154 = math.tanh %153 : vector<1x32xf32>
    %155 = arith.mulf %150, %154 : vector<1x32xf32>
    %c2_29 = arith.constant 2 : index
    %c0_30 = arith.constant 0 : index
    %156 = vector.load %arg3[%c2_29, %c0_30] : memref<8x32xf32, #tpu.memory_space<vmem>>, vector<1x32xf32>
    tpu.vector_store %arg3[%c2_29, %c0_30], %155 {strides = array<i32>} : memref<8x32xf32, #tpu.memory_space<vmem>>, vector<1x32xf32>,
    %157 = vector.extract_strided_slice %106 {offsets = [3, 0], sizes = [1, 128], strides = [1, 1]} : vector<8x128xf32> to vector<1x128xf32>
    %cst_31 = arith.constant dense<0.000000e+00> : vector<1x128xf32>
    %158 = tpu.matmul %155, %1, %cst_31 {dimension_numbers = #tpu.dot_dimension_numbers<[1], [0], [0], [1], [0, 0, 1, 1], [], []>} : vector<1x32xf32>, vector<32x128xf32>, vector<1x128xf32> -> vector<1x128xf32>
    %159 = arith.addf %157, %158 : vector<1x128xf32>
    %160 = math.tanh %159 : vector<1x128xf32>
    %161 = arith.mulf %15, %160 : vector<1x128xf32>
    %162 = arith.addf %161, %18 : vector<1x128xf32>
    %163 = vector.extract_strided_slice %162 {offsets = [0, 0], sizes = [1, 32], strides = [1, 1]} : vector<1x128xf32> to vector<1x32xf32>
    %164 = vector.extract_strided_slice %162 {offsets = [0, 32], sizes = [1, 32], strides = [1, 1]} : vector<1x128xf32> to vector<1x32xf32>
    %165 = vector.extract_strided_slice %162 {offsets = [0, 64], sizes = [1, 32], strides = [1, 1]} : vector<1x128xf32> to vector<1x32xf32>
    %166 = vector.extract_strided_slice %162 {offsets = [0, 96], sizes = [1, 32], strides = [1, 1]} : vector<1x128xf32> to vector<1x32xf32>
    %167 = arith.mulf %164, %153 : vector<1x32xf32>
    %168 = arith.mulf %163, %165 : vector<1x32xf32>
    %169 = arith.addf %167, %168 : vector<1x32xf32>
    %170 = math.tanh %169 : vector<1x32xf32>
    %171 = arith.mulf %166, %170 : vector<1x32xf32>
    %c3_32 = arith.constant 3 : index
    %c0_33 = arith.constant 0 : index
    %172 = vector.load %arg3[%c3_32, %c0_33] : memref<8x32xf32, #tpu.memory_space<vmem>>, vector<1x32xf32>
    tpu.vector_store %arg3[%c3_32, %c0_33], %171 {strides = array<i32>} : memref<8x32xf32, #tpu.memory_space<vmem>>, vector<1x32xf32>,
    %173 = vector.extract_strided_slice %106 {offsets = [4, 0], sizes = [1, 128], strides = [1, 1]} : vector<8x128xf32> to vector<1x128xf32>
    %cst_34 = arith.constant dense<0.000000e+00> : vector<1x128xf32>
    %174 = tpu.matmul %171, %1, %cst_34 {dimension_numbers = #tpu.dot_dimension_numbers<[1], [0], [0], [1], [0, 0, 1, 1], [], []>} : vector<1x32xf32>, vector<32x128xf32>, vector<1x128xf32> -> vector<1x128xf32>
    %175 = arith.addf %173, %174 : vector<1x128xf32>
    %176 = math.tanh %175 : vector<1x128xf32>
    %177 = arith.mulf %15, %176 : vector<1x128xf32>
    %178 = arith.addf %177, %18 : vector<1x128xf32>
    %179 = vector.extract_strided_slice %178 {offsets = [0, 0], sizes = [1, 32], strides = [1, 1]} : vector<1x128xf32> to vector<1x32xf32>
    %180 = vector.extract_strided_slice %178 {offsets = [0, 32], sizes = [1, 32], strides = [1, 1]} : vector<1x128xf32> to vector<1x32xf32>
    %181 = vector.extract_strided_slice %178 {offsets = [0, 64], sizes = [1, 32], strides = [1, 1]} : vector<1x128xf32> to vector<1x32xf32>
    %182 = vector.extract_strided_slice %178 {offsets = [0, 96], sizes = [1, 32], strides = [1, 1]} : vector<1x128xf32> to vector<1x32xf32>
    %183 = arith.mulf %180, %169 : vector<1x32xf32>
    %184 = arith.mulf %179, %181 : vector<1x32xf32>
    %185 = arith.addf %183, %184 : vector<1x32xf32>
    %186 = math.tanh %185 : vector<1x32xf32>
    %187 = arith.mulf %182, %186 : vector<1x32xf32>
    %c4_35 = arith.constant 4 : index
    %c0_36 = arith.constant 0 : index
    %188 = vector.load %arg3[%c4_35, %c0_36] : memref<8x32xf32, #tpu.memory_space<vmem>>, vector<1x32xf32>
    tpu.vector_store %arg3[%c4_35, %c0_36], %187 {strides = array<i32>} : memref<8x32xf32, #tpu.memory_space<vmem>>, vector<1x32xf32>,
    %189 = vector.extract_strided_slice %106 {offsets = [5, 0], sizes = [1, 128], strides = [1, 1]} : vector<8x128xf32> to vector<1x128xf32>
    %cst_37 = arith.constant dense<0.000000e+00> : vector<1x128xf32>
    %190 = tpu.matmul %187, %1, %cst_37 {dimension_numbers = #tpu.dot_dimension_numbers<[1], [0], [0], [1], [0, 0, 1, 1], [], []>} : vector<1x32xf32>, vector<32x128xf32>, vector<1x128xf32> -> vector<1x128xf32>
    %191 = arith.addf %189, %190 : vector<1x128xf32>
    %192 = math.tanh %191 : vector<1x128xf32>
    %193 = arith.mulf %15, %192 : vector<1x128xf32>
    %194 = arith.addf %193, %18 : vector<1x128xf32>
    %195 = vector.extract_strided_slice %194 {offsets = [0, 0], sizes = [1, 32], strides = [1, 1]} : vector<1x128xf32> to vector<1x32xf32>
    %196 = vector.extract_strided_slice %194 {offsets = [0, 32], sizes = [1, 32], strides = [1, 1]} : vector<1x128xf32> to vector<1x32xf32>
    %197 = vector.extract_strided_slice %194 {offsets = [0, 64], sizes = [1, 32], strides = [1, 1]} : vector<1x128xf32> to vector<1x32xf32>
    %198 = vector.extract_strided_slice %194 {offsets = [0, 96], sizes = [1, 32], strides = [1, 1]} : vector<1x128xf32> to vector<1x32xf32>
    %199 = arith.mulf %196, %185 : vector<1x32xf32>
    %200 = arith.mulf %195, %197 : vector<1x32xf32>
    %201 = arith.addf %199, %200 : vector<1x32xf32>
    %202 = math.tanh %201 : vector<1x32xf32>
    %203 = arith.mulf %198, %202 : vector<1x32xf32>
    %c5_38 = arith.constant 5 : index
    %c0_39 = arith.constant 0 : index
    %204 = vector.load %arg3[%c5_38, %c0_39] : memref<8x32xf32, #tpu.memory_space<vmem>>, vector<1x32xf32>
    tpu.vector_store %arg3[%c5_38, %c0_39], %203 {strides = array<i32>} : memref<8x32xf32, #tpu.memory_space<vmem>>, vector<1x32xf32>,
    %205 = vector.extract_strided_slice %106 {offsets = [6, 0], sizes = [1, 128], strides = [1, 1]} : vector<8x128xf32> to vector<1x128xf32>
    %cst_40 = arith.constant dense<0.000000e+00> : vector<1x128xf32>
    %206 = tpu.matmul %203, %1, %cst_40 {dimension_numbers = #tpu.dot_dimension_numbers<[1], [0], [0], [1], [0, 0, 1, 1], [], []>} : vector<1x32xf32>, vector<32x128xf32>, vector<1x128xf32> -> vector<1x128xf32>
    %207 = arith.addf %205, %206 : vector<1x128xf32>
    %208 = math.tanh %207 : vector<1x128xf32>
    %209 = arith.mulf %15, %208 : vector<1x128xf32>
    %210 = arith.addf %209, %18 : vector<1x128xf32>
    %211 = vector.extract_strided_slice %210 {offsets = [0, 0], sizes = [1, 32], strides = [1, 1]} : vector<1x128xf32> to vector<1x32xf32>
    %212 = vector.extract_strided_slice %210 {offsets = [0, 32], sizes = [1, 32], strides = [1, 1]} : vector<1x128xf32> to vector<1x32xf32>
    %213 = vector.extract_strided_slice %210 {offsets = [0, 64], sizes = [1, 32], strides = [1, 1]} : vector<1x128xf32> to vector<1x32xf32>
    %214 = vector.extract_strided_slice %210 {offsets = [0, 96], sizes = [1, 32], strides = [1, 1]} : vector<1x128xf32> to vector<1x32xf32>
    %215 = arith.mulf %212, %201 : vector<1x32xf32>
    %216 = arith.mulf %211, %213 : vector<1x32xf32>
    %217 = arith.addf %215, %216 : vector<1x32xf32>
    %218 = math.tanh %217 : vector<1x32xf32>
    %219 = arith.mulf %214, %218 : vector<1x32xf32>
    %c6_41 = arith.constant 6 : index
    %c0_42 = arith.constant 0 : index
    %220 = vector.load %arg3[%c6_41, %c0_42] : memref<8x32xf32, #tpu.memory_space<vmem>>, vector<1x32xf32>
    tpu.vector_store %arg3[%c6_41, %c0_42], %219 {strides = array<i32>} : memref<8x32xf32, #tpu.memory_space<vmem>>, vector<1x32xf32>,
    %221 = vector.extract_strided_slice %106 {offsets = [7, 0], sizes = [1, 128], strides = [1, 1]} : vector<8x128xf32> to vector<1x128xf32>
    %cst_43 = arith.constant dense<0.000000e+00> : vector<1x128xf32>
    %222 = tpu.matmul %219, %1, %cst_43 {dimension_numbers = #tpu.dot_dimension_numbers<[1], [0], [0], [1], [0, 0, 1, 1], [], []>} : vector<1x32xf32>, vector<32x128xf32>, vector<1x128xf32> -> vector<1x128xf32>
    %223 = arith.addf %221, %222 : vector<1x128xf32>
    %224 = math.tanh %223 : vector<1x128xf32>
    %225 = arith.mulf %15, %224 : vector<1x128xf32>
    %226 = arith.addf %225, %18 : vector<1x128xf32>
    %227 = vector.extract_strided_slice %226 {offsets = [0, 0], sizes = [1, 32], strides = [1, 1]} : vector<1x128xf32> to vector<1x32xf32>
    %228 = vector.extract_strided_slice %226 {offsets = [0, 32], sizes = [1, 32], strides = [1, 1]} : vector<1x128xf32> to vector<1x32xf32>
    %229 = vector.extract_strided_slice %226 {offsets = [0, 64], sizes = [1, 32], strides = [1, 1]} : vector<1x128xf32> to vector<1x32xf32>
    %230 = vector.extract_strided_slice %226 {offsets = [0, 96], sizes = [1, 32], strides = [1, 1]} : vector<1x128xf32> to vector<1x32xf32>
    %231 = arith.mulf %228, %217 : vector<1x32xf32>
    %232 = arith.mulf %227, %229 : vector<1x32xf32>
    %233 = arith.addf %231, %232 : vector<1x32xf32>
    %234 = math.tanh %233 : vector<1x32xf32>
    %235 = arith.mulf %230, %234 : vector<1x32xf32>
    %c7_44 = arith.constant 7 : index
    %c0_45 = arith.constant 0 : index
    %236 = vector.load %arg3[%c7_44, %c0_45] : memref<8x32xf32, #tpu.memory_space<vmem>>, vector<1x32xf32>
    tpu.vector_store %arg3[%c7_44, %c0_45], %235 {strides = array<i32>} : memref<8x32xf32, #tpu.memory_space<vmem>>, vector<1x32xf32>,
    %c0_46 = arith.constant 0 : index
    %c0_47 = arith.constant 0 : index
    %237 = vector.load %arg3[%c0_46, %c0_47] : memref<8x32xf32, #tpu.memory_space<vmem>>, vector<8x32xf32>
    %cst_48 = arith.constant dense<0.000000e+00> : vector<8x128xf32>
    %238 = tpu.matmul %237, %2, %cst_48 {dimension_numbers = #tpu.dot_dimension_numbers<[1], [0], [0], [1], [0, 0, 1, 1], [], []>} : vector<8x32xf32>, vector<32x128xf32>, vector<8x128xf32> -> vector<8x128xf32>
    %239 = tpu.iota {dimensions = array<i32: 1>} : vector<1x5xi32>
    %240 = tpu.iota {dimensions = array<i32: 1>} : vector<5x5xi32>
    %241 = arith.sitofp %240 : vector<5x5xi32> to vector<5x5xf32>
    %242 = tpu.iota {dimensions = array<i32: 0>} : vector<5x5xi32>
    %243 = tpu.iota {dimensions = array<i32: 1>} : vector<5x5xi32>
    %244 = arith.cmpi eq, %242, %243 : vector<5x5xi32>
    %c3_i32_49 = arith.constant 3 : i32
    %245 = vector.broadcast %c3_i32_49 : i32 to vector<1x5xi32>
    %246 = arith.cmpi eq, %239, %245 : vector<1x5xi32>
    %cst_50 = arith.constant 0.000000e+00 : f32
    %cst_51 = arith.constant -1.000000e+04 : f32
    %247 = vector.broadcast %cst_50 : f32 to vector<1x5xf32>
    %248 = vector.broadcast %cst_51 : f32 to vector<1x5xf32>
    %249 = arith.select %246, %247, %248 : vector<1x5xi1>, vector<1x5xf32>
    %250 = vector.extract_strided_slice %238 {offsets = [0, 0], sizes = [1, 5], strides = [1, 1]} : vector<8x128xf32> to vector<1x5xf32>
    %251 = vector.extract_strided_slice %238 {offsets = [7, 5], sizes = [1, 5], strides = [1, 1]} : vector<8x128xf32> to vector<1x5xf32>
    %252 = arith.addf %250, %251 : vector<1x5xf32>
    %253 = arith.addf %252, %6 : vector<1x5xf32>
    %254 = vector.broadcast %249 : vector<1x5xf32> to vector<5x5xf32>
    %255 = arith.addf %3, %254 : vector<5x5xf32>
    %cst_52 = arith.constant dense<0xFF800000> : vector<5xf32>
    %256 = vector.multi_reduction <maximumf>, %255, %cst_52 [1] : vector<5x5xf32> to vector<5xf32>
    %257 = vector.shape_cast %256 : vector<5xf32> to vector<5x1xf32>
    %cst_53 = arith.constant 0.000000e+00 : f32
    %258 = vector.shape_cast %257 : vector<5x1xf32> to vector<5x1xf32>
    %259 = vector.broadcast %258 : vector<5x1xf32> to vector<5x5xf32>
    %260 = vector.broadcast %cst_53 : f32 to vector<5x5xf32>
    %261 = arith.select %244, %259, %260 : vector<5x5xi1>, vector<5x5xf32>
    %cst_54 = arith.constant dense<0.000000e+00> : vector<5xf32>
    %262 = vector.multi_reduction <add>, %261, %cst_54 [0] : vector<5x5xf32> to vector<5xf32>
    %263 = vector.shape_cast %262 : vector<5xf32> to vector<1x5xf32>
    %264 = arith.addf %263, %253 : vector<1x5xf32>
    %265 = vector.extract_strided_slice %238 {offsets = [1, 0], sizes = [1, 5], strides = [1, 1]} : vector<8x128xf32> to vector<1x5xf32>
    %266 = vector.extract_strided_slice %238 {offsets = [6, 5], sizes = [1, 5], strides = [1, 1]} : vector<8x128xf32> to vector<1x5xf32>
    %267 = arith.addf %265, %266 : vector<1x5xf32>
    %268 = arith.addf %267, %6 : vector<1x5xf32>
    %269 = vector.broadcast %264 : vector<1x5xf32> to vector<5x5xf32>
    %270 = arith.addf %3, %269 : vector<5x5xf32>
    %cst_55 = arith.constant dense<0xFF800000> : vector<5xf32>
    %271 = vector.multi_reduction <maximumf>, %270, %cst_55 [1] : vector<5x5xf32> to vector<5xf32>
    %272 = vector.shape_cast %271 : vector<5xf32> to vector<5x1xf32>
    %273 = vector.broadcast %272 : vector<5x1xf32> to vector<5x5xf32>
    %274 = arith.cmpf oeq, %270, %273 : vector<5x5xf32>
    %cst_56 = arith.constant 1.000000e+09 : f32
    %275 = vector.broadcast %cst_56 : f32 to vector<5x5xf32>
    %276 = arith.select %274, %241, %275 : vector<5x5xi1>, vector<5x5xf32>
    %cst_57 = arith.constant dense<0x7F800000> : vector<5xf32>
    %277 = vector.multi_reduction <minimumf>, %276, %cst_57 [1] : vector<5x5xf32> to vector<5xf32>
    %278 = vector.shape_cast %277 : vector<5xf32> to vector<5x1xf32>
    %cst_58 = arith.constant 0.000000e+00 : f32
    %279 = vector.shape_cast %272 : vector<5x1xf32> to vector<5x1xf32>
    %280 = vector.broadcast %279 : vector<5x1xf32> to vector<5x5xf32>
    %281 = vector.broadcast %cst_58 : f32 to vector<5x5xf32>
    %282 = arith.select %244, %280, %281 : vector<5x5xi1>, vector<5x5xf32>
    %cst_59 = arith.constant dense<0.000000e+00> : vector<5xf32>
    %283 = vector.multi_reduction <add>, %282, %cst_59 [0] : vector<5x5xf32> to vector<5xf32>
    %284 = vector.shape_cast %283 : vector<5xf32> to vector<1x5xf32>
    %cst_60 = arith.constant 0.000000e+00 : f32
    %285 = vector.shape_cast %278 : vector<5x1xf32> to vector<5x1xf32>
    %286 = vector.broadcast %285 : vector<5x1xf32> to vector<5x5xf32>
    %287 = vector.broadcast %cst_60 : f32 to vector<5x5xf32>
    %288 = arith.select %244, %286, %287 : vector<5x5xi1>, vector<5x5xf32>
    %cst_61 = arith.constant dense<0.000000e+00> : vector<5xf32>
    %289 = vector.multi_reduction <add>, %288, %cst_61 [0] : vector<5x5xf32> to vector<5xf32>
    %290 = vector.shape_cast %289 : vector<5xf32> to vector<1x5xf32>
    %291 = arith.fptosi %290 : vector<1x5xf32> to vector<1x5xi32>
    %292 = arith.addf %284, %268 : vector<1x5xf32>
    %293 = vector.extract_strided_slice %238 {offsets = [2, 0], sizes = [1, 5], strides = [1, 1]} : vector<8x128xf32> to vector<1x5xf32>
    %294 = vector.extract_strided_slice %238 {offsets = [5, 5], sizes = [1, 5], strides = [1, 1]} : vector<8x128xf32> to vector<1x5xf32>
    %295 = arith.addf %293, %294 : vector<1x5xf32>
    %296 = arith.addf %295, %6 : vector<1x5xf32>
    %297 = vector.broadcast %292 : vector<1x5xf32> to vector<5x5xf32>
    %298 = arith.addf %3, %297 : vector<5x5xf32>
    %cst_62 = arith.constant dense<0xFF800000> : vector<5xf32>
    %299 = vector.multi_reduction <maximumf>, %298, %cst_62 [1] : vector<5x5xf32> to vector<5xf32>
    %300 = vector.shape_cast %299 : vector<5xf32> to vector<5x1xf32>
    %301 = vector.broadcast %300 : vector<5x1xf32> to vector<5x5xf32>
    %302 = arith.cmpf oeq, %298, %301 : vector<5x5xf32>
    %cst_63 = arith.constant 1.000000e+09 : f32
    %303 = vector.broadcast %cst_63 : f32 to vector<5x5xf32>
    %304 = arith.select %302, %241, %303 : vector<5x5xi1>, vector<5x5xf32>
    %cst_64 = arith.constant dense<0x7F800000> : vector<5xf32>
    %305 = vector.multi_reduction <minimumf>, %304, %cst_64 [1] : vector<5x5xf32> to vector<5xf32>
    %306 = vector.shape_cast %305 : vector<5xf32> to vector<5x1xf32>
    %cst_65 = arith.constant 0.000000e+00 : f32
    %307 = vector.shape_cast %300 : vector<5x1xf32> to vector<5x1xf32>
    %308 = vector.broadcast %307 : vector<5x1xf32> to vector<5x5xf32>
    %309 = vector.broadcast %cst_65 : f32 to vector<5x5xf32>
    %310 = arith.select %244, %308, %309 : vector<5x5xi1>, vector<5x5xf32>
    %cst_66 = arith.constant dense<0.000000e+00> : vector<5xf32>
    %311 = vector.multi_reduction <add>, %310, %cst_66 [0] : vector<5x5xf32> to vector<5xf32>
    %312 = vector.shape_cast %311 : vector<5xf32> to vector<1x5xf32>
    %cst_67 = arith.constant 0.000000e+00 : f32
    %313 = vector.shape_cast %306 : vector<5x1xf32> to vector<5x1xf32>
    %314 = vector.broadcast %313 : vector<5x1xf32> to vector<5x5xf32>
    %315 = vector.broadcast %cst_67 : f32 to vector<5x5xf32>
    %316 = arith.select %244, %314, %315 : vector<5x5xi1>, vector<5x5xf32>
    %cst_68 = arith.constant dense<0.000000e+00> : vector<5xf32>
    %317 = vector.multi_reduction <add>, %316, %cst_68 [0] : vector<5x5xf32> to vector<5xf32>
    %318 = vector.shape_cast %317 : vector<5xf32> to vector<1x5xf32>
    %319 = arith.fptosi %318 : vector<1x5xf32> to vector<1x5xi32>
    %320 = arith.addf %312, %296 : vector<1x5xf32>
    %321 = vector.extract_strided_slice %238 {offsets = [3, 0], sizes = [1, 5], strides = [1, 1]} : vector<8x128xf32> to vector<1x5xf32>
    %322 = vector.extract_strided_slice %238 {offsets = [4, 5], sizes = [1, 5], strides = [1, 1]} : vector<8x128xf32> to vector<1x5xf32>
    %323 = arith.addf %321, %322 : vector<1x5xf32>
    %324 = arith.addf %323, %6 : vector<1x5xf32>
    %325 = vector.broadcast %320 : vector<1x5xf32> to vector<5x5xf32>
    %326 = arith.addf %3, %325 : vector<5x5xf32>
    %cst_69 = arith.constant dense<0xFF800000> : vector<5xf32>
    %327 = vector.multi_reduction <maximumf>, %326, %cst_69 [1] : vector<5x5xf32> to vector<5xf32>
    %328 = vector.shape_cast %327 : vector<5xf32> to vector<5x1xf32>
    %329 = vector.broadcast %328 : vector<5x1xf32> to vector<5x5xf32>
    %330 = arith.cmpf oeq, %326, %329 : vector<5x5xf32>
    %cst_70 = arith.constant 1.000000e+09 : f32
    %331 = vector.broadcast %cst_70 : f32 to vector<5x5xf32>
    %332 = arith.select %330, %241, %331 : vector<5x5xi1>, vector<5x5xf32>
    %cst_71 = arith.constant dense<0x7F800000> : vector<5xf32>
    %333 = vector.multi_reduction <minimumf>, %332, %cst_71 [1] : vector<5x5xf32> to vector<5xf32>
    %334 = vector.shape_cast %333 : vector<5xf32> to vector<5x1xf32>
    %cst_72 = arith.constant 0.000000e+00 : f32
    %335 = vector.shape_cast %328 : vector<5x1xf32> to vector<5x1xf32>
    %336 = vector.broadcast %335 : vector<5x1xf32> to vector<5x5xf32>
    %337 = vector.broadcast %cst_72 : f32 to vector<5x5xf32>
    %338 = arith.select %244, %336, %337 : vector<5x5xi1>, vector<5x5xf32>
    %cst_73 = arith.constant dense<0.000000e+00> : vector<5xf32>
    %339 = vector.multi_reduction <add>, %338, %cst_73 [0] : vector<5x5xf32> to vector<5xf32>
    %340 = vector.shape_cast %339 : vector<5xf32> to vector<1x5xf32>
    %cst_74 = arith.constant 0.000000e+00 : f32
    %341 = vector.shape_cast %334 : vector<5x1xf32> to vector<5x1xf32>
    %342 = vector.broadcast %341 : vector<5x1xf32> to vector<5x5xf32>
    %343 = vector.broadcast %cst_74 : f32 to vector<5x5xf32>
    %344 = arith.select %244, %342, %343 : vector<5x5xi1>, vector<5x5xf32>
    %cst_75 = arith.constant dense<0.000000e+00> : vector<5xf32>
    %345 = vector.multi_reduction <add>, %344, %cst_75 [0] : vector<5x5xf32> to vector<5xf32>
    %346 = vector.shape_cast %345 : vector<5xf32> to vector<1x5xf32>
    %347 = arith.fptosi %346 : vector<1x5xf32> to vector<1x5xi32>
    %348 = arith.addf %340, %324 : vector<1x5xf32>
    %349 = vector.extract_strided_slice %238 {offsets = [4, 0], sizes = [1, 5], strides = [1, 1]} : vector<8x128xf32> to vector<1x5xf32>
    %350 = vector.extract_strided_slice %238 {offsets = [3, 5], sizes = [1, 5], strides = [1, 1]} : vector<8x128xf32> to vector<1x5xf32>
    %351 = arith.addf %349, %350 : vector<1x5xf32>
    %352 = arith.addf %351, %6 : vector<1x5xf32>
    %353 = vector.broadcast %348 : vector<1x5xf32> to vector<5x5xf32>
    %354 = arith.addf %3, %353 : vector<5x5xf32>
    %cst_76 = arith.constant dense<0xFF800000> : vector<5xf32>
    %355 = vector.multi_reduction <maximumf>, %354, %cst_76 [1] : vector<5x5xf32> to vector<5xf32>
    %356 = vector.shape_cast %355 : vector<5xf32> to vector<5x1xf32>
    %357 = vector.broadcast %356 : vector<5x1xf32> to vector<5x5xf32>
    %358 = arith.cmpf oeq, %354, %357 : vector<5x5xf32>
    %cst_77 = arith.constant 1.000000e+09 : f32
    %359 = vector.broadcast %cst_77 : f32 to vector<5x5xf32>
    %360 = arith.select %358, %241, %359 : vector<5x5xi1>, vector<5x5xf32>
    %cst_78 = arith.constant dense<0x7F800000> : vector<5xf32>
    %361 = vector.multi_reduction <minimumf>, %360, %cst_78 [1] : vector<5x5xf32> to vector<5xf32>
    %362 = vector.shape_cast %361 : vector<5xf32> to vector<5x1xf32>
    %cst_79 = arith.constant 0.000000e+00 : f32
    %363 = vector.shape_cast %356 : vector<5x1xf32> to vector<5x1xf32>
    %364 = vector.broadcast %363 : vector<5x1xf32> to vector<5x5xf32>
    %365 = vector.broadcast %cst_79 : f32 to vector<5x5xf32>
    %366 = arith.select %244, %364, %365 : vector<5x5xi1>, vector<5x5xf32>
    %cst_80 = arith.constant dense<0.000000e+00> : vector<5xf32>
    %367 = vector.multi_reduction <add>, %366, %cst_80 [0] : vector<5x5xf32> to vector<5xf32>
    %368 = vector.shape_cast %367 : vector<5xf32> to vector<1x5xf32>
    %cst_81 = arith.constant 0.000000e+00 : f32
    %369 = vector.shape_cast %362 : vector<5x1xf32> to vector<5x1xf32>
    %370 = vector.broadcast %369 : vector<5x1xf32> to vector<5x5xf32>
    %371 = vector.broadcast %cst_81 : f32 to vector<5x5xf32>
    %372 = arith.select %244, %370, %371 : vector<5x5xi1>, vector<5x5xf32>
    %cst_82 = arith.constant dense<0.000000e+00> : vector<5xf32>
    %373 = vector.multi_reduction <add>, %372, %cst_82 [0] : vector<5x5xf32> to vector<5xf32>
    %374 = vector.shape_cast %373 : vector<5xf32> to vector<1x5xf32>
    %375 = arith.fptosi %374 : vector<1x5xf32> to vector<1x5xi32>
    %376 = arith.addf %368, %352 : vector<1x5xf32>
    %377 = vector.extract_strided_slice %238 {offsets = [5, 0], sizes = [1, 5], strides = [1, 1]} : vector<8x128xf32> to vector<1x5xf32>
    %378 = vector.extract_strided_slice %238 {offsets = [2, 5], sizes = [1, 5], strides = [1, 1]} : vector<8x128xf32> to vector<1x5xf32>
    %379 = arith.addf %377, %378 : vector<1x5xf32>
    %380 = arith.addf %379, %6 : vector<1x5xf32>
    %381 = vector.broadcast %376 : vector<1x5xf32> to vector<5x5xf32>
    %382 = arith.addf %3, %381 : vector<5x5xf32>
    %cst_83 = arith.constant dense<0xFF800000> : vector<5xf32>
    %383 = vector.multi_reduction <maximumf>, %382, %cst_83 [1] : vector<5x5xf32> to vector<5xf32>
    %384 = vector.shape_cast %383 : vector<5xf32> to vector<5x1xf32>
    %385 = vector.broadcast %384 : vector<5x1xf32> to vector<5x5xf32>
    %386 = arith.cmpf oeq, %382, %385 : vector<5x5xf32>
    %cst_84 = arith.constant 1.000000e+09 : f32
    %387 = vector.broadcast %cst_84 : f32 to vector<5x5xf32>
    %388 = arith.select %386, %241, %387 : vector<5x5xi1>, vector<5x5xf32>
    %cst_85 = arith.constant dense<0x7F800000> : vector<5xf32>
    %389 = vector.multi_reduction <minimumf>, %388, %cst_85 [1] : vector<5x5xf32> to vector<5xf32>
    %390 = vector.shape_cast %389 : vector<5xf32> to vector<5x1xf32>
    %cst_86 = arith.constant 0.000000e+00 : f32
    %391 = vector.shape_cast %384 : vector<5x1xf32> to vector<5x1xf32>
    %392 = vector.broadcast %391 : vector<5x1xf32> to vector<5x5xf32>
    %393 = vector.broadcast %cst_86 : f32 to vector<5x5xf32>
    %394 = arith.select %244, %392, %393 : vector<5x5xi1>, vector<5x5xf32>
    %cst_87 = arith.constant dense<0.000000e+00> : vector<5xf32>
    %395 = vector.multi_reduction <add>, %394, %cst_87 [0] : vector<5x5xf32> to vector<5xf32>
    %396 = vector.shape_cast %395 : vector<5xf32> to vector<1x5xf32>
    %cst_88 = arith.constant 0.000000e+00 : f32
    %397 = vector.shape_cast %390 : vector<5x1xf32> to vector<5x1xf32>
    %398 = vector.broadcast %397 : vector<5x1xf32> to vector<5x5xf32>
    %399 = vector.broadcast %cst_88 : f32 to vector<5x5xf32>
    %400 = arith.select %244, %398, %399 : vector<5x5xi1>, vector<5x5xf32>
    %cst_89 = arith.constant dense<0.000000e+00> : vector<5xf32>
    %401 = vector.multi_reduction <add>, %400, %cst_89 [0] : vector<5x5xf32> to vector<5xf32>
    %402 = vector.shape_cast %401 : vector<5xf32> to vector<1x5xf32>
    %403 = arith.fptosi %402 : vector<1x5xf32> to vector<1x5xi32>
    %404 = arith.addf %396, %380 : vector<1x5xf32>
    %405 = vector.extract_strided_slice %238 {offsets = [6, 0], sizes = [1, 5], strides = [1, 1]} : vector<8x128xf32> to vector<1x5xf32>
    %406 = vector.extract_strided_slice %238 {offsets = [1, 5], sizes = [1, 5], strides = [1, 1]} : vector<8x128xf32> to vector<1x5xf32>
    %407 = arith.addf %405, %406 : vector<1x5xf32>
    %408 = arith.addf %407, %6 : vector<1x5xf32>
    %409 = vector.broadcast %404 : vector<1x5xf32> to vector<5x5xf32>
    %410 = arith.addf %3, %409 : vector<5x5xf32>
    %cst_90 = arith.constant dense<0xFF800000> : vector<5xf32>
    %411 = vector.multi_reduction <maximumf>, %410, %cst_90 [1] : vector<5x5xf32> to vector<5xf32>
    %412 = vector.shape_cast %411 : vector<5xf32> to vector<5x1xf32>
    %413 = vector.broadcast %412 : vector<5x1xf32> to vector<5x5xf32>
    %414 = arith.cmpf oeq, %410, %413 : vector<5x5xf32>
    %cst_91 = arith.constant 1.000000e+09 : f32
    %415 = vector.broadcast %cst_91 : f32 to vector<5x5xf32>
    %416 = arith.select %414, %241, %415 : vector<5x5xi1>, vector<5x5xf32>
    %cst_92 = arith.constant dense<0x7F800000> : vector<5xf32>
    %417 = vector.multi_reduction <minimumf>, %416, %cst_92 [1] : vector<5x5xf32> to vector<5xf32>
    %418 = vector.shape_cast %417 : vector<5xf32> to vector<5x1xf32>
    %cst_93 = arith.constant 0.000000e+00 : f32
    %419 = vector.shape_cast %412 : vector<5x1xf32> to vector<5x1xf32>
    %420 = vector.broadcast %419 : vector<5x1xf32> to vector<5x5xf32>
    %421 = vector.broadcast %cst_93 : f32 to vector<5x5xf32>
    %422 = arith.select %244, %420, %421 : vector<5x5xi1>, vector<5x5xf32>
    %cst_94 = arith.constant dense<0.000000e+00> : vector<5xf32>
    %423 = vector.multi_reduction <add>, %422, %cst_94 [0] : vector<5x5xf32> to vector<5xf32>
    %424 = vector.shape_cast %423 : vector<5xf32> to vector<1x5xf32>
    %cst_95 = arith.constant 0.000000e+00 : f32
    %425 = vector.shape_cast %418 : vector<5x1xf32> to vector<5x1xf32>
    %426 = vector.broadcast %425 : vector<5x1xf32> to vector<5x5xf32>
    %427 = vector.broadcast %cst_95 : f32 to vector<5x5xf32>
    %428 = arith.select %244, %426, %427 : vector<5x5xi1>, vector<5x5xf32>
    %cst_96 = arith.constant dense<0.000000e+00> : vector<5xf32>
    %429 = vector.multi_reduction <add>, %428, %cst_96 [0] : vector<5x5xf32> to vector<5xf32>
    %430 = vector.shape_cast %429 : vector<5xf32> to vector<1x5xf32>
    %431 = arith.fptosi %430 : vector<1x5xf32> to vector<1x5xi32>
    %432 = arith.addf %424, %408 : vector<1x5xf32>
    %433 = vector.extract_strided_slice %238 {offsets = [7, 0], sizes = [1, 5], strides = [1, 1]} : vector<8x128xf32> to vector<1x5xf32>
    %434 = vector.extract_strided_slice %238 {offsets = [0, 5], sizes = [1, 5], strides = [1, 1]} : vector<8x128xf32> to vector<1x5xf32>
    %435 = arith.addf %433, %434 : vector<1x5xf32>
    %436 = arith.addf %435, %6 : vector<1x5xf32>
    %437 = vector.broadcast %432 : vector<1x5xf32> to vector<5x5xf32>
    %438 = arith.addf %3, %437 : vector<5x5xf32>
    %cst_97 = arith.constant dense<0xFF800000> : vector<5xf32>
    %439 = vector.multi_reduction <maximumf>, %438, %cst_97 [1] : vector<5x5xf32> to vector<5xf32>
    %440 = vector.shape_cast %439 : vector<5xf32> to vector<5x1xf32>
    %441 = vector.broadcast %440 : vector<5x1xf32> to vector<5x5xf32>
    %442 = arith.cmpf oeq, %438, %441 : vector<5x5xf32>
    %cst_98 = arith.constant 1.000000e+09 : f32
    %443 = vector.broadcast %cst_98 : f32 to vector<5x5xf32>
    %444 = arith.select %442, %241, %443 : vector<5x5xi1>, vector<5x5xf32>
    %cst_99 = arith.constant dense<0x7F800000> : vector<5xf32>
    %445 = vector.multi_reduction <minimumf>, %444, %cst_99 [1] : vector<5x5xf32> to vector<5xf32>
    %446 = vector.shape_cast %445 : vector<5xf32> to vector<5x1xf32>
    %cst_100 = arith.constant 0.000000e+00 : f32
    %447 = vector.shape_cast %440 : vector<5x1xf32> to vector<5x1xf32>
    %448 = vector.broadcast %447 : vector<5x1xf32> to vector<5x5xf32>
    %449 = vector.broadcast %cst_100 : f32 to vector<5x5xf32>
    %450 = arith.select %244, %448, %449 : vector<5x5xi1>, vector<5x5xf32>
    %cst_101 = arith.constant dense<0.000000e+00> : vector<5xf32>
    %451 = vector.multi_reduction <add>, %450, %cst_101 [0] : vector<5x5xf32> to vector<5xf32>
    %452 = vector.shape_cast %451 : vector<5xf32> to vector<1x5xf32>
    %cst_102 = arith.constant 0.000000e+00 : f32
    %453 = vector.shape_cast %446 : vector<5x1xf32> to vector<5x1xf32>
    %454 = vector.broadcast %453 : vector<5x1xf32> to vector<5x5xf32>
    %455 = vector.broadcast %cst_102 : f32 to vector<5x5xf32>
    %456 = arith.select %244, %454, %455 : vector<5x5xi1>, vector<5x5xf32>
    %cst_103 = arith.constant dense<0.000000e+00> : vector<5xf32>
    %457 = vector.multi_reduction <add>, %456, %cst_103 [0] : vector<5x5xf32> to vector<5xf32>
    %458 = vector.shape_cast %457 : vector<5xf32> to vector<1x5xf32>
    %459 = arith.fptosi %458 : vector<1x5xf32> to vector<1x5xi32>
    %460 = arith.addf %452, %436 : vector<1x5xf32>
    %461 = vector.extract_strided_slice %3 {offsets = [4, 0], sizes = [1, 5], strides = [1, 1]} : vector<5x5xf32> to vector<1x5xf32>
    %462 = arith.addf %460, %461 : vector<1x5xf32>
    %cst_104 = arith.constant dense<0xFF800000> : vector<1xf32>
    %463 = vector.multi_reduction <maximumf>, %462, %cst_104 [1] : vector<1x5xf32> to vector<1xf32>
    %464 = vector.shape_cast %463 : vector<1xf32> to vector<1x1xf32>
    %465 = vector.broadcast %464 : vector<1x1xf32> to vector<1x5xf32>
    %466 = arith.cmpf oeq, %462, %465 : vector<1x5xf32>
    %467 = arith.sitofp %239 : vector<1x5xi32> to vector<1x5xf32>
    %cst_105 = arith.constant 1.000000e+09 : f32
    %468 = vector.broadcast %cst_105 : f32 to vector<1x5xf32>
    %469 = arith.select %466, %467, %468 : vector<1x5xi1>, vector<1x5xf32>
    %cst_106 = arith.constant dense<0x7F800000> : vector<1xf32>
    %470 = vector.multi_reduction <minimumf>, %469, %cst_106 [1] : vector<1x5xf32> to vector<1xf32>
    %471 = vector.shape_cast %470 : vector<1xf32> to vector<1x1xf32>
    %472 = arith.fptosi %471 : vector<1x1xf32> to vector<1x1xi32>
    %473 = tpu.iota {dimensions = array<i32: 1>} : vector<1x128xi32>
    %c0_i32_107 = arith.constant 0 : i32
    %474 = vector.broadcast %c0_i32_107 : i32 to vector<1x128xi32>
    %475 = arith.cmpi eq, %473, %474 : vector<1x128xi32>
    %cst_108 = arith.constant 0.000000e+00 : f32
    %476 = vector.shape_cast %464 : vector<1x1xf32> to vector<1x1xf32>
    %477 = vector.broadcast %476 : vector<1x1xf32> to vector<1x128xf32>
    %478 = vector.broadcast %cst_108 : f32 to vector<1x128xf32>
    %479 = arith.select %475, %477, %478 : vector<1x128xi1>, vector<1x128xf32>
    %c8_i32 = arith.constant 8 : i32
    %480 = vector.broadcast %c8_i32 : i32 to vector<1x128xi32>
    %481 = arith.cmpi eq, %473, %480 : vector<1x128xi32>
    %482 = arith.sitofp %472 : vector<1x1xi32> to vector<1x1xf32>
    %483 = vector.shape_cast %482 : vector<1x1xf32> to vector<1x1xf32>
    %484 = vector.broadcast %483 : vector<1x1xf32> to vector<1x128xf32>
    %485 = arith.select %481, %484, %479 : vector<1x128xi1>, vector<1x128xf32>
    %486 = vector.broadcast %472 : vector<1x1xi32> to vector<1x5xi32>
    %487 = arith.cmpi eq, %239, %486 : vector<1x5xi32>
    %c0_i32_109 = arith.constant 0 : i32
    %488 = vector.broadcast %c0_i32_109 : i32 to vector<1x5xi32>
    %489 = arith.select %487, %459, %488 : vector<1x5xi1>, vector<1x5xi32>
    %cst_110 = arith.constant dense<0> : vector<1xi32>
    %490 = vector.multi_reduction <add>, %489, %cst_110 [1] : vector<1x5xi32> to vector<1xi32>
    %491 = vector.shape_cast %490 : vector<1xi32> to vector<1x1xi32>
    %c7_i32_111 = arith.constant 7 : i32
    %492 = vector.broadcast %c7_i32_111 : i32 to vector<1x128xi32>
    %493 = arith.cmpi eq, %473, %492 : vector<1x128xi32>
    %494 = arith.sitofp %491 : vector<1x1xi32> to vector<1x1xf32>
    %495 = vector.shape_cast %494 : vector<1x1xf32> to vector<1x1xf32>
    %496 = vector.broadcast %495 : vector<1x1xf32> to vector<1x128xf32>
    %497 = arith.select %493, %496, %485 : vector<1x128xi1>, vector<1x128xf32>
    %498 = vector.broadcast %491 : vector<1x1xi32> to vector<1x5xi32>
    %499 = arith.cmpi eq, %239, %498 : vector<1x5xi32>
    %c0_i32_112 = arith.constant 0 : i32
    %500 = vector.broadcast %c0_i32_112 : i32 to vector<1x5xi32>
    %501 = arith.select %499, %431, %500 : vector<1x5xi1>, vector<1x5xi32>
    %cst_113 = arith.constant dense<0> : vector<1xi32>
    %502 = vector.multi_reduction <add>, %501, %cst_113 [1] : vector<1x5xi32> to vector<1xi32>
    %503 = vector.shape_cast %502 : vector<1xi32> to vector<1x1xi32>
    %c6_i32_114 = arith.constant 6 : i32
    %504 = vector.broadcast %c6_i32_114 : i32 to vector<1x128xi32>
    %505 = arith.cmpi eq, %473, %504 : vector<1x128xi32>
    %506 = arith.sitofp %503 : vector<1x1xi32> to vector<1x1xf32>
    %507 = vector.shape_cast %506 : vector<1x1xf32> to vector<1x1xf32>
    %508 = vector.broadcast %507 : vector<1x1xf32> to vector<1x128xf32>
    %509 = arith.select %505, %508, %497 : vector<1x128xi1>, vector<1x128xf32>
    %510 = vector.broadcast %503 : vector<1x1xi32> to vector<1x5xi32>
    %511 = arith.cmpi eq, %239, %510 : vector<1x5xi32>
    %c0_i32_115 = arith.constant 0 : i32
    %512 = vector.broadcast %c0_i32_115 : i32 to vector<1x5xi32>
    %513 = arith.select %511, %403, %512 : vector<1x5xi1>, vector<1x5xi32>
    %cst_116 = arith.constant dense<0> : vector<1xi32>
    %514 = vector.multi_reduction <add>, %513, %cst_116 [1] : vector<1x5xi32> to vector<1xi32>
    %515 = vector.shape_cast %514 : vector<1xi32> to vector<1x1xi32>
    %c5_i32_117 = arith.constant 5 : i32
    %516 = vector.broadcast %c5_i32_117 : i32 to vector<1x128xi32>
    %517 = arith.cmpi eq, %473, %516 : vector<1x128xi32>
    %518 = arith.sitofp %515 : vector<1x1xi32> to vector<1x1xf32>
    %519 = vector.shape_cast %518 : vector<1x1xf32> to vector<1x1xf32>
    %520 = vector.broadcast %519 : vector<1x1xf32> to vector<1x128xf32>
    %521 = arith.select %517, %520, %509 : vector<1x128xi1>, vector<1x128xf32>
    %522 = vector.broadcast %515 : vector<1x1xi32> to vector<1x5xi32>
    %523 = arith.cmpi eq, %239, %522 : vector<1x5xi32>
    %c0_i32_118 = arith.constant 0 : i32
    %524 = vector.broadcast %c0_i32_118 : i32 to vector<1x5xi32>
    %525 = arith.select %523, %375, %524 : vector<1x5xi1>, vector<1x5xi32>
    %cst_119 = arith.constant dense<0> : vector<1xi32>
    %526 = vector.multi_reduction <add>, %525, %cst_119 [1] : vector<1x5xi32> to vector<1xi32>
    %527 = vector.shape_cast %526 : vector<1xi32> to vector<1x1xi32>
    %c4_i32_120 = arith.constant 4 : i32
    %528 = vector.broadcast %c4_i32_120 : i32 to vector<1x128xi32>
    %529 = arith.cmpi eq, %473, %528 : vector<1x128xi32>
    %530 = arith.sitofp %527 : vector<1x1xi32> to vector<1x1xf32>
    %531 = vector.shape_cast %530 : vector<1x1xf32> to vector<1x1xf32>
    %532 = vector.broadcast %531 : vector<1x1xf32> to vector<1x128xf32>
    %533 = arith.select %529, %532, %521 : vector<1x128xi1>, vector<1x128xf32>
    %534 = vector.broadcast %527 : vector<1x1xi32> to vector<1x5xi32>
    %535 = arith.cmpi eq, %239, %534 : vector<1x5xi32>
    %c0_i32_121 = arith.constant 0 : i32
    %536 = vector.broadcast %c0_i32_121 : i32 to vector<1x5xi32>
    %537 = arith.select %535, %347, %536 : vector<1x5xi1>, vector<1x5xi32>
    %cst_122 = arith.constant dense<0> : vector<1xi32>
    %538 = vector.multi_reduction <add>, %537, %cst_122 [1] : vector<1x5xi32> to vector<1xi32>
    %539 = vector.shape_cast %538 : vector<1xi32> to vector<1x1xi32>
    %c3_i32_123 = arith.constant 3 : i32
    %540 = vector.broadcast %c3_i32_123 : i32 to vector<1x128xi32>
    %541 = arith.cmpi eq, %473, %540 : vector<1x128xi32>
    %542 = arith.sitofp %539 : vector<1x1xi32> to vector<1x1xf32>
    %543 = vector.shape_cast %542 : vector<1x1xf32> to vector<1x1xf32>
    %544 = vector.broadcast %543 : vector<1x1xf32> to vector<1x128xf32>
    %545 = arith.select %541, %544, %533 : vector<1x128xi1>, vector<1x128xf32>
    %546 = vector.broadcast %539 : vector<1x1xi32> to vector<1x5xi32>
    %547 = arith.cmpi eq, %239, %546 : vector<1x5xi32>
    %c0_i32_124 = arith.constant 0 : i32
    %548 = vector.broadcast %c0_i32_124 : i32 to vector<1x5xi32>
    %549 = arith.select %547, %319, %548 : vector<1x5xi1>, vector<1x5xi32>
    %cst_125 = arith.constant dense<0> : vector<1xi32>
    %550 = vector.multi_reduction <add>, %549, %cst_125 [1] : vector<1x5xi32> to vector<1xi32>
    %551 = vector.shape_cast %550 : vector<1xi32> to vector<1x1xi32>
    %c2_i32_126 = arith.constant 2 : i32
    %552 = vector.broadcast %c2_i32_126 : i32 to vector<1x128xi32>
    %553 = arith.cmpi eq, %473, %552 : vector<1x128xi32>
    %554 = arith.sitofp %551 : vector<1x1xi32> to vector<1x1xf32>
    %555 = vector.shape_cast %554 : vector<1x1xf32> to vector<1x1xf32>
    %556 = vector.broadcast %555 : vector<1x1xf32> to vector<1x128xf32>
    %557 = arith.select %553, %556, %545 : vector<1x128xi1>, vector<1x128xf32>
    %558 = vector.broadcast %551 : vector<1x1xi32> to vector<1x5xi32>
    %559 = arith.cmpi eq, %239, %558 : vector<1x5xi32>
    %c0_i32_127 = arith.constant 0 : i32
    %560 = vector.broadcast %c0_i32_127 : i32 to vector<1x5xi32>
    %561 = arith.select %559, %291, %560 : vector<1x5xi1>, vector<1x5xi32>
    %cst_128 = arith.constant dense<0> : vector<1xi32>
    %562 = vector.multi_reduction <add>, %561, %cst_128 [1] : vector<1x5xi32> to vector<1xi32>
    %563 = vector.shape_cast %562 : vector<1xi32> to vector<1x1xi32>
    %c1_i32_129 = arith.constant 1 : i32
    %564 = vector.broadcast %c1_i32_129 : i32 to vector<1x128xi32>
    %565 = arith.cmpi eq, %473, %564 : vector<1x128xi32>
    %566 = arith.sitofp %563 : vector<1x1xi32> to vector<1x1xf32>
    %567 = vector.shape_cast %566 : vector<1x1xf32> to vector<1x1xf32>
    %568 = vector.broadcast %567 : vector<1x1xf32> to vector<1x128xf32>
    %569 = arith.select %565, %568, %557 : vector<1x128xi1>, vector<1x128xf32>
    %c0_130 = arith.constant 0 : index
    %c0_131 = arith.constant 0 : index
    %570 = vector.load %arg2[%c0_130, %c0_131] : memref<1x128xf32, #tpu.memory_space<vmem>>, vector<1x128xf32>
    tpu.vector_store %arg2[%c0_130, %c0_131], %569 {strides = array<i32>} : memref<1x128xf32, #tpu.memory_space<vmem>>, vector<1x128xf32>,
    return
  }
}

</mosaic_0001>

<llo_original>
// kernel: forward.1
$region0: #{forward.1}
  #allocation0 [shape = 'u32[]', space=smem, size = 0x4, offset = 0x4, fixed_abs, tag = 'smem constant byte address 0x4 - core index']
  #allocation1 [shape = 'u32[144,128]{1,0:T(1,128)}', space=vmem, size = 0x12000, scoped, tag = 'internal scratch']
  #allocation2 [shape = 'f32[8,32]{1,0:T(8,128)}', space=vmem, size = 0x1000, scoped, tag = 'scratch operand']
  %s0 = inlined_call_operand.hbm [shape: s32[8], index: 0, kind: input, shape index: {}]
  %s1 = inlined_call_operand.hbm [shape: f32[120,128], index: 1, kind: input, shape index: {}]
  %s2 = inlined_call_operand.vmem [shape: f32[1,128], index: 2, kind: output, shape index: {}]
  %s3 = sld [smem:[#allocation0]]
  $region26: #{forward.1} parent=0
    _
  %s5 = ssub.s32 1, %s3
  %s6 = scalar_select 0, %s5, %s3
  $region1: #{forward.1} parent=0
    #allocation3 [shape = 'u8[512]{0}', space=smem, size = 0x200, scoped, tag = 'input window, operand 0, single buffered']
    #allocation4 [shape = 's32[1]{0}', space=sflag, size = 0x4, scoped, tag = 'scoped memory for forward.1']
    #allocation5 [shape = 's32[1]{0}', space=sflag, size = 0x4, scoped, tag = 'scoped memory for forward.1']
    #allocation6 [shape = 'u8[61440]{0}', space=vmem, size = 0xf000, scoped, tag = 'input window, operand 1, single buffered']
    %7 = vsyncpa [#allocation5], 0
    %8 = vsyncpa [#allocation4], 0
    // Predicated region
    $region2: #{forward.1} parent=1 // pred_check
      _
    $region3: #{forward.1} parent=1 // pred_check_branch
      %10 = sbr.rel (0) target = $region5
    $region4: #{forward.1} parent=1 // pred_region
      %s12 = ssub.s32 16, 16
      %13 = vsyncadd [#allocation5], %s12
      %16 = dma.hbm_to_smem %s0, 16, [#allocation3], [#allocation5]
    $region5: #{forward.1} parent=1 // pred_fallthru
      _
    // Predicated region
    $region6: #{forward.1} parent=1 // pred_check
      _
    $region7: #{forward.1} parent=1 // pred_check_branch
      %18 = sbr.rel (0) target = $region9
    $region8: #{forward.1} parent=1 // pred_region
      %s20 = ssub.s32 1920, 1920
      %21 = vsyncadd [#allocation4], %s20
      %s22 = sshll.u32 [#allocation6], 4
      %s23 = int_to_ptr.vmem [resolvable:$true] %s22
      %28 = dma.hbm_to_vmem [thread:$0]  %s1, 1920, %s23, [#allocation4], 128, 128, 8
    $region9: #{forward.1} parent=1 // pred_fallthru
      _
    // Predicated region
    $region10: #{forward.1} parent=1 // pred_check
      _
    $region11: #{forward.1} parent=1 // pred_check_branch
      %30 = sbr.rel (0) target = $region13
    $region12: #{forward.1} parent=1 // pred_region
      %31 = dma.done [#allocation5], 16
    $region13: #{forward.1} parent=1 // pred_fallthru
      _
    // Predicated region
    $region14: #{forward.1} parent=1 // pred_check
      _
    $region15: #{forward.1} parent=1 // pred_check_branch
      %33 = sbr.rel (0) target = $region17
    $region16: #{forward.1} parent=1 // pred_region
      %34 = dma.done [#allocation4], 1920
    $region17: #{forward.1} parent=1 // pred_fallthru
      _
    %35 = sfence
    %v36 = vld [vmem:[#allocation6] sm:$0xff]
    %v37 = vld [vmem:[#allocation6 + $0x8] sm:$0xff]
    %v38 = vld [vmem:[#allocation6 + $0x10] sm:$0xff]
    %v39 = vld [vmem:[#allocation6 + $0x18] sm:$0xff]
    %v40 = vld [vmem:[#allocation6 + $0x20] sm:$0xff]
    %v41 = vld [vmem:[#allocation6 + $0x28] sm:$0xff]
    %v42 = vld [vmem:[#allocation6 + $0x30] sm:$0xff]
    %v43 = vld [vmem:[#allocation6 + $0x38] sm:$0xff]
    %v44 = vld [vmem:[#allocation6 + $0x40] sm:$0xff]
    %v45 = vld [vmem:[#allocation6 + $0x48] sm:$0xff]
    %v46 = vld [vmem:[#allocation6 + $0x50] sm:$0xff]
    %v47 = vld [vmem:[#allocation6 + $0x58] sm:$0xff]
    %v48 = vld [vmem:[#allocation6 + $0x60] sm:$0xff]
    %v49 = vld [vmem:[#allocation6 + $0x68] sm:$0x1f]
    %v50 = vld [vmem:[#allocation6 + $0x70] sm:$0x1]
    %v51 = vld [vmem:[#allocation6 + $0x71] sm:$0x1]
    %v52 = vld [vmem:[#allocation6 + $0x72] sm:$0x1]
    %v53 = vlaneseq
    %v54 = vand.u32 %v53, 127
    %vm55 = vcmp.ge.s32.totalorder %v54, 64
    %vm56 = vcmp.lt.s32.totalorder %v54, 96
    %vm57 = vmand %vm55, %vm56
    %v58 = vsel %vm57, 1.0, 0.5
    %v59 = vsel %vm57, 0.0, 0.5
    %v60 = vlaneseq
    %v61 = vshrl.u32 %v60, 7
    %s62 = sld [smem:[#allocation3]]
    %vm63 = vcmp.eq.s32.totalorder %v61, 0
    %v64 = vstv %s62
    %v65 = vsel %vm63, %v64, 0
    %vm66 = vcmp.eq.s32.totalorder %v61, 7
    %v67 = vsel %vm66, %v64, 0
    %s68 = sld [smem:[#allocation3 + $0x1]]
    %vm69 = vcmp.eq.s32.totalorder %v61, 1
    %v70 = vstv %s68
    %v71 = vsel %vm69, %v70, %v65
    %vm72 = vcmp.eq.s32.totalorder %v61, 6
    %v73 = vsel %vm72, %v70, %v67
    %s74 = sld [smem:[#allocation3 + $0x2]]
    %vm75 = vcmp.eq.s32.totalorder %v61, 2
    %v76 = vstv %s74
    %v77 = vsel %vm75, %v76, %v71
    %vm78 = vcmp.eq.s32.totalorder %v61, 5
    %v79 = vsel %vm78, %v76, %v73
    %s80 = sld [smem:[#allocation3 + $0x3]]
    %vm81 = vcmp.eq.s32.totalorder %v61, 3
    %v82 = vstv %s80
    %v83 = vsel %vm81, %v82, %v77
    %vm84 = vcmp.eq.s32.totalorder %v61, 4
    %v85 = vsel %vm84, %v82, %v79
    %s86 = sld [smem:[#allocation3 + $0x4]]
    %v87 = vstv %s86
    %v88 = vsel %vm84, %v87, %v83
    %v89 = vsel %vm81, %v87, %v85
    %s90 = sld [smem:[#allocation3 + $0x5]]
    %v91 = vstv %s90
    %v92 = vsel %vm78, %v91, %v88
    %v93 = vsel %vm75, %v91, %v89
    %s94 = sld [smem:[#allocation3 + $0x6]]
    %v95 = vstv %s94
    %v96 = vsel %vm72, %v95, %v92
    %v97 = vsel %vm69, %v95, %v93
    %s98 = sld [smem:[#allocation3 + $0x7]]
    %v99 = vstv %s98
    %v100 = vsel %vm66, %v99, %v96
    %v101 = vsel %vm63, %v99, %v97
    %vm102 = vcmp.eq.s32.totalorder %v54, %v100
    %v103 = vadd.s32 %v101, 20
    %vm104 = vcmp.eq.s32.totalorder %v54, %v103
    %vm105 = vmor %vm102, %vm104
    %v106 = vsel %vm105, 1, 0
    %v107 = vcvt.s32.f32 %v106
    %v108 = vlaneseq
    %v109 = vshrl.u32 %v108, 7
    %v110 = vsub.s32 0, %v109
    %v111 = vrot.slane %v50, %v110
    %vm112 = vcmask 326656
    %v114 = vsel %vm112, %v107, 0
    %116 = vmatprep.subr.mxu0 0.0
    %117 = vmatpush1.msra.mxu0 0.0
    %118 = vmatprep.subr.mxu0 0.0
    %119 = vmatpush1.msra.mxu0 0.0
    %120 = vmatprep.subr.mxu0 0.0
    %121 = vmatpush1.msra.mxu0 0.0
    %122 = vmatprep.subr.mxu0 0.0
    %123 = vmatpush1.msra.mxu0 0.0
    %124 = vmatprep.subr.mxu0 0.0
    %125 = vmatpush1.msra.mxu0 0.0
    %126 = vmatprep.subr.mxu0 0.0
    %127 = vmatpush1.msra.mxu0 0.0
    %128 = vmatprep.subr.mxu0 0.0
    %129 = vmatpush1.msra.mxu0 0.0
    %130 = vmatprep.subr.mxu0 0.0
    %131 = vmatpush1.msra.mxu0 0.0
    %132 = vmatprep.subr.mxu0 0.0
    %133 = vmatpush1.msra.mxu0 0.0
    %134 = vmatprep.subr.mxu0 0.0
    %135 = vmatpush1.msra.mxu0 0.0
    %136 = vmatprep.subr.mxu0 0.0
    %137 = vmatpush1.msra.mxu0 0.0
    %138 = vmatprep.subr.mxu0 0.0
    %139 = vmatpush1.msra.mxu0 %v40
    %140 = vmatprep.subr.mxu0 0.0
    %141 = vmatpush1.msra.mxu0 %v39
    %142 = vmatprep.subr.mxu0 0.0
    %143 = vmatpush1.msra.mxu0 %v38
    %144 = vmatprep.subr.mxu0 0.0
    %145 = vmatpush1.msra.mxu0 %v37
    %146 = vmatprep.subr.mxu0 0.0
    %147 = vmatpush1.msra.mxu0 %v36
    %148 = vmatprep.subr.mxu0 0.0
    %149 = vmatpush2.msra.mxu0 0.0
    %150 = vmatprep.subr.mxu0 0.0
    %151 = vmatpush2.msra.mxu0 0.0
    %152 = vmatprep.subr.mxu0 0.0
    %153 = vmatpush2.msra.mxu0 0.0
    %154 = vmatprep.subr.mxu0 0.0
    %155 = vmatpush2.msra.mxu0 0.0
    %156 = vmatprep.subr.mxu0 0.0
    %157 = vmatpush2.msra.mxu0 0.0
    %158 = vmatprep.subr.mxu0 0.0
    %159 = vmatpush2.msra.mxu0 0.0
    %160 = vmatprep.subr.mxu0 0.0
    %161 = vmatpush2.msra.mxu0 0.0
    %162 = vmatprep.subr.mxu0 0.0
    %163 = vmatpush2.msra.mxu0 0.0
    %164 = vmatprep.subr.mxu0 0.0
    %165 = vmatpush2.msra.mxu0 0.0
    %166 = vmatprep.subr.mxu0 0.0
    %167 = vmatpush2.msra.mxu0 0.0
    %168 = vmatprep.subr.mxu0 0.0
    %169 = vmatpush2.msra.mxu0 0.0
    %170 = vmatprep.subr.mxu0 0.0
    %171 = vmatpush2.msra.mxu0 0.0
    %172 = vmatprep.subr.mxu0 0.0
    %173 = vmatpush2.msra.mxu0 0.0
    %174 = vmatprep.subr.mxu0 0.0
    %175 = vmatpush2.msra.mxu0 0.0
    %176 = vmatprep.subr.mxu0 0.0
    %177 = vmatpush2.msra.mxu0 0.0
    %178 = vmatprep.subr.mxu0 0.0
    %179 = vmatpush2.msra.mxu0 0.0
    %180 = vmatprep.mubr.f32.mxu0 0.0
    %181 = vmatmul.mubr.f32.gmra.mxu0 %v114
    %v182 = vpop.f32.mrf.mxu0
    %v183 = vadd.f32 %v111, %v182
    %v184 = vpop.f32.mrf.mxu0
    %185 = vdwg.mxu0
    %vm186 = vcmask 261120
    %v188 = vsel %vm186, %v51, 0
    %190 = vmatprep.subr.mxu0 0.0
    %191 = vmatpush1.msra.mxu0 0.0
    %192 = vmatprep.subr.mxu0 0.0
    %193 = vmatpush1.msra.mxu0 0.0
    %194 = vmatprep.subr.mxu0 0.0
    %195 = vmatpush1.msra.mxu0 0.0
    %196 = vmatprep.subr.mxu0 0.0
    %197 = vmatpush1.msra.mxu0 0.0
    %198 = vmatprep.subr.mxu0 0.0
    %199 = vmatpush1.msra.mxu0 0.0
    %200 = vmatprep.subr.mxu0 0.0
    %201 = vmatpush1.msra.mxu0 0.0
    %202 = vmatprep.subr.mxu0 0.0
    %203 = vmatpush1.msra.mxu0 0.0
    %204 = vmatprep.subr.mxu0 0.0
    %205 = vmatpush1.msra.mxu0 0.0
    %206 = vmatprep.subr.mxu0 0.0
    %207 = vmatpush1.msra.mxu0 0.0
    %208 = vmatprep.subr.mxu0 0.0
    %209 = vmatpush1.msra.mxu0 0.0
    %210 = vmatprep.subr.mxu0 0.0
    %211 = vmatpush1.msra.mxu0 0.0
    %212 = vmatprep.subr.mxu0 0.0
    %213 = vmatpush1.msra.mxu0 0.0
    %214 = vmatprep.subr.mxu0 0.0
    %215 = vmatpush1.msra.mxu0 %v44
    %216 = vmatprep.subr.mxu0 0.0
    %217 = vmatpush1.msra.mxu0 %v43
    %218 = vmatprep.subr.mxu0 0.0
    %219 = vmatpush1.msra.mxu0 %v42
    %220 = vmatprep.subr.mxu0 0.0
    %221 = vmatpush1.msra.mxu0 %v41
    %222 = vmatprep.subr.mxu0 0.0
    %223 = vmatpush2.msra.mxu0 0.0
    %224 = vmatprep.subr.mxu0 0.0
    %225 = vmatpush2.msra.mxu0 0.0
    %226 = vmatprep.subr.mxu0 0.0
    %227 = vmatpush2.msra.mxu0 0.0
    %228 = vmatprep.subr.mxu0 0.0
    %229 = vmatpush2.msra.mxu0 0.0
    %230 = vmatprep.subr.mxu0 0.0
    %231 = vmatpush2.msra.mxu0 0.0
    %232 = vmatprep.subr.mxu0 0.0
    %233 = vmatpush2.msra.mxu0 0.0
    %234 = vmatprep.subr.mxu0 0.0
    %235 = vmatpush2.msra.mxu0 0.0
    %236 = vmatprep.subr.mxu0 0.0
    %237 = vmatpush2.msra.mxu0 0.0
    %238 = vmatprep.subr.mxu0 0.0
    %239 = vmatpush2.msra.mxu0 0.0
    %240 = vmatprep.subr.mxu0 0.0
    %241 = vmatpush2.msra.mxu0 0.0
    %242 = vmatprep.subr.mxu0 0.0
    %243 = vmatpush2.msra.mxu0 0.0
    %244 = vmatprep.subr.mxu0 0.0
    %245 = vmatpush2.msra.mxu0 0.0
    %246 = vmatprep.subr.mxu0 0.0
    %247 = vmatpush2.msra.mxu0 0.0
    %248 = vmatprep.subr.mxu0 0.0
    %249 = vmatpush2.msra.mxu0 0.0
    %250 = vmatprep.subr.mxu0 0.0
    %251 = vmatpush2.msra.mxu0 0.0
    %252 = vmatprep.subr.mxu0 0.0
    %253 = vmatpush2.msra.mxu0 0.0
    %254 = vmatprep.mubr.f32.mxu0 0.0
    %255 = vmatmul.mubr.f32.gmra.mxu0 %v188
    %v256 = vpop.f32.mrf.mxu0
    %v257 = vadd.f32 0.0, %v256
    %v258 = vpop.f32.mrf.mxu0
    %259 = vdwg.mxu0
    %v260 = vadd.f32 %v183, %v257
    %v261 = vtanh.pop %v260
    %v262 = vmul.f32 %v58, %v261
    %v263 = vadd.f32 %v262, %v59
    %v264 = vmul.f32 %v263, %v51
    %266 = vrot.lane.b32.xlu0 %v263, 64
    %v267 = vpop.permute.xlu0 %266
    %v269 = vmul.f32 %v263, %v267
    %271 = vrot.lane.b32.xlu0 %v269, 32
    %v272 = vpop.permute.xlu0 %271
    %v274 = vadd.f32 %v264, %v272
    %v275 = vtanh.pop %v274
    %277 = vrot.lane.b32.xlu0 %v275, 64
    %v278 = vpop.permute.xlu0 %277
    %v280 = vmul.f32 %v263, %v278
    %282 = vrot.lane.b32.xlu0 %v280, 32
    %v283 = vpop.permute.xlu0 %282
    %vm285 = vcmask 253952
    %286 = vst.msk [vmem:[#allocation2] sm:$0x1] %vm285, %v283
    %v287 = vsel %vm186, %v283, 0
    %289 = vmatprep.subr.mxu0 0.0
    %290 = vmatpush1.msra.mxu0 0.0
    %291 = vmatprep.subr.mxu0 0.0
    %292 = vmatpush1.msra.mxu0 0.0
    %293 = vmatprep.subr.mxu0 0.0
    %294 = vmatpush1.msra.mxu0 0.0
    %295 = vmatprep.subr.mxu0 0.0
    %296 = vmatpush1.msra.mxu0 0.0
    %297 = vmatprep.subr.mxu0 0.0
    %298 = vmatpush1.msra.mxu0 0.0
    %299 = vmatprep.subr.mxu0 0.0
    %300 = vmatpush1.msra.mxu0 0.0
    %301 = vmatprep.subr.mxu0 0.0
    %302 = vmatpush1.msra.mxu0 0.0
    %303 = vmatprep.subr.mxu0 0.0
    %304 = vmatpush1.msra.mxu0 0.0
    %305 = vmatprep.subr.mxu0 0.0
    %306 = vmatpush1.msra.mxu0 0.0
    %307 = vmatprep.subr.mxu0 0.0
    %308 = vmatpush1.msra.mxu0 0.0
    %309 = vmatprep.subr.mxu0 0.0
    %310 = vmatpush1.msra.mxu0 0.0
    %311 = vmatprep.subr.mxu0 0.0
    %312 = vmatpush1.msra.mxu0 0.0
    %313 = vmatprep.subr.mxu0 0.0
    %314 = vmatpush1.msra.mxu0 %v44
    %315 = vmatprep.subr.mxu0 0.0
    %316 = vmatpush1.msra.mxu0 %v43
    %317 = vmatprep.subr.mxu0 0.0
    %318 = vmatpush1.msra.mxu0 %v42
    %319 = vmatprep.subr.mxu0 0.0
    %320 = vmatpush1.msra.mxu0 %v41
    %321 = vmatprep.subr.mxu0 0.0
    %322 = vmatpush2.msra.mxu0 0.0
    %323 = vmatprep.subr.mxu0 0.0
    %324 = vmatpush2.msra.mxu0 0.0
    %325 = vmatprep.subr.mxu0 0.0
    %326 = vmatpush2.msra.mxu0 0.0
    %327 = vmatprep.subr.mxu0 0.0
    %328 = vmatpush2.msra.mxu0 0.0
    %329 = vmatprep.subr.mxu0 0.0
    %330 = vmatpush2.msra.mxu0 0.0
    %331 = vmatprep.subr.mxu0 0.0
    %332 = vmatpush2.msra.mxu0 0.0
    %333 = vmatprep.subr.mxu0 0.0
    %334 = vmatpush2.msra.mxu0 0.0
    %335 = vmatprep.subr.mxu0 0.0
    %336 = vmatpush2.msra.mxu0 0.0
    %337 = vmatprep.subr.mxu0 0.0
    %338 = vmatpush2.msra.mxu0 0.0
    %339 = vmatprep.subr.mxu0 0.0
    %340 = vmatpush2.msra.mxu0 0.0
    %341 = vmatprep.subr.mxu0 0.0
    %342 = vmatpush2.msra.mxu0 0.0
    %343 = vmatprep.subr.mxu0 0.0
    %344 = vmatpush2.msra.mxu0 0.0
    %345 = vmatprep.subr.mxu0 0.0
    %346 = vmatpush2.msra.mxu0 0.0
    %347 = vmatprep.subr.mxu0 0.0
    %348 = vmatpush2.msra.mxu0 0.0
    %349 = vmatprep.subr.mxu0 0.0
    %350 = vmatpush2.msra.mxu0 0.0
    %351 = vmatprep.subr.mxu0 0.0
    %352 = vmatpush2.msra.mxu0 0.0
    %353 = vmatprep.mubr.f32.mxu0 0.0
    %354 = vmatmul.mubr.f32.gmra.mxu0 %v287
    %v355 = vpop.f32.mrf.mxu0
    %v356 = vadd.f32 0.0, %v355
    %v357 = vpop.f32.mrf.mxu0
    %358 = vdwg.mxu0
    %v360 = vrot.slane %v356, 7
    %v362 = vadd.f32 %v183, %v360
    %v363 = vtanh.pop %v362
    %v364 = vmul.f32 %v58, %v363
    %v365 = vadd.f32 %v364, %v59
    %v367 = vrot.slane %v274, 7
    %v369 = vmul.f32 %v365, %v367
    %371 = vrot.lane.b32.xlu0 %v365, 64
    %v372 = vpop.permute.xlu0 %371
    %v374 = vmul.f32 %v365, %v372
    %376 = vrot.lane.b32.xlu0 %v374, 32
    %v377 = vpop.permute.xlu0 %376
    %v379 = vadd.f32 %v369, %v377
    %v380 = vtanh.pop %v379
    %382 = vrot.lane.b32.xlu0 %v380, 64
    %v383 = vpop.permute.xlu0 %382
    %v385 = vmul.f32 %v365, %v383
    %387 = vrot.lane.b32.xlu0 %v385, 32
    %v388 = vpop.permute.xlu0 %387
    %vm390 = vcmask 254977
    %391 = vst.msk [vmem:[#allocation2] sm:$0x2] %vm390, %v388
    %v392 = vrot.slane %v385, 1
    %393 = vrot.lane.b32.xlu0 %v392, 32
    %v394 = vpop.permute.xlu0 %393
    %v395 = vsel %vm186, %v394, 0
    %397 = vmatprep.subr.mxu0 0.0
    %398 = vmatpush1.msra.mxu0 0.0
    %399 = vmatprep.subr.mxu0 0.0
    %400 = vmatpush1.msra.mxu0 0.0
    %401 = vmatprep.subr.mxu0 0.0
    %402 = vmatpush1.msra.mxu0 0.0
    %403 = vmatprep.subr.mxu0 0.0
    %404 = vmatpush1.msra.mxu0 0.0
    %405 = vmatprep.subr.mxu0 0.0
    %406 = vmatpush1.msra.mxu0 0.0
    %407 = vmatprep.subr.mxu0 0.0
    %408 = vmatpush1.msra.mxu0 0.0
    %409 = vmatprep.subr.mxu0 0.0
    %410 = vmatpush1.msra.mxu0 0.0
    %411 = vmatprep.subr.mxu0 0.0
    %412 = vmatpush1.msra.mxu0 0.0
    %413 = vmatprep.subr.mxu0 0.0
    %414 = vmatpush1.msra.mxu0 0.0
    %415 = vmatprep.subr.mxu0 0.0
    %416 = vmatpush1.msra.mxu0 0.0
    %417 = vmatprep.subr.mxu0 0.0
    %418 = vmatpush1.msra.mxu0 0.0
    %419 = vmatprep.subr.mxu0 0.0
    %420 = vmatpush1.msra.mxu0 0.0
    %421 = vmatprep.subr.mxu0 0.0
    %422 = vmatpush1.msra.mxu0 %v44
    %423 = vmatprep.subr.mxu0 0.0
    %424 = vmatpush1.msra.mxu0 %v43
    %425 = vmatprep.subr.mxu0 0.0
    %426 = vmatpush1.msra.mxu0 %v42
    %427 = vmatprep.subr.mxu0 0.0
    %428 = vmatpush1.msra.mxu0 %v41
    %429 = vmatprep.subr.mxu0 0.0
    %430 = vmatpush2.msra.mxu0 0.0
    %431 = vmatprep.subr.mxu0 0.0
    %432 = vmatpush2.msra.mxu0 0.0
    %433 = vmatprep.subr.mxu0 0.0
    %434 = vmatpush2.msra.mxu0 0.0
    %435 = vmatprep.subr.mxu0 0.0
    %436 = vmatpush2.msra.mxu0 0.0
    %437 = vmatprep.subr.mxu0 0.0
    %438 = vmatpush2.msra.mxu0 0.0
    %439 = vmatprep.subr.mxu0 0.0
    %440 = vmatpush2.msra.mxu0 0.0
    %441 = vmatprep.subr.mxu0 0.0
    %442 = vmatpush2.msra.mxu0 0.0
    %443 = vmatprep.subr.mxu0 0.0
    %444 = vmatpush2.msra.mxu0 0.0
    %445 = vmatprep.subr.mxu0 0.0
    %446 = vmatpush2.msra.mxu0 0.0
    %447 = vmatprep.subr.mxu0 0.0
    %448 = vmatpush2.msra.mxu0 0.0
    %449 = vmatprep.subr.mxu0 0.0
    %450 = vmatpush2.msra.mxu0 0.0
    %451 = vmatprep.subr.mxu0 0.0
    %452 = vmatpush2.msra.mxu0 0.0
    %453 = vmatprep.subr.mxu0 0.0
    %454 = vmatpush2.msra.mxu0 0.0
    %455 = vmatprep.subr.mxu0 0.0
    %456 = vmatpush2.msra.mxu0 0.0
    %457 = vmatprep.subr.mxu0 0.0
    %458 = vmatpush2.msra.mxu0 0.0
    %459 = vmatprep.subr.mxu0 0.0
    %460 = vmatpush2.msra.mxu0 0.0
    %461 = vmatprep.mubr.f32.mxu0 0.0
    %462 = vmatmul.mubr.f32.gmra.mxu0 %v395
    %v463 = vpop.f32.mrf.mxu0
    %v464 = vadd.f32 0.0, %v463
    %v465 = vpop.f32.mrf.mxu0
    %466 = vdwg.mxu0
    %v468 = vrot.slane %v464, 6
    %v470 = vadd.f32 %v183, %v468
    %v471 = vtanh.pop %v470
    %v472 = vmul.f32 %v58, %v471
    %v473 = vadd.f32 %v472, %v59
    %v475 = vrot.slane %v379, 7
    %v477 = vmul.f32 %v473, %v475
    %479 = vrot.lane.b32.xlu0 %v473, 64
    %v480 = vpop.permute.xlu0 %479
    %v482 = vmul.f32 %v473, %v480
    %484 = vrot.lane.b32.xlu0 %v482, 32
    %v485 = vpop.permute.xlu0 %484
    %v487 = vadd.f32 %v477, %v485
    %v488 = vtanh.pop %v487
    %490 = vrot.lane.b32.xlu0 %v488, 64
    %v491 = vpop.permute.xlu0 %490
    %v493 = vmul.f32 %v473, %v491
    %495 = vrot.lane.b32.xlu0 %v493, 32
    %v496 = vpop.permute.xlu0 %495
    %vm498 = vcmask 256002
    %499 = vst.msk [vmem:[#allocation2] sm:$0x4] %vm498, %v496
    %v500 = vrot.slane %v493, 2
    %501 = vrot.lane.b32.xlu0 %v500, 32
    %v502 = vpop.permute.xlu0 %501
    %v503 = vsel %vm186, %v502, 0
    %505 = vmatprep.subr.mxu0 0.0
    %506 = vmatpush1.msra.mxu0 0.0
    %507 = vmatprep.subr.mxu0 0.0
    %508 = vmatpush1.msra.mxu0 0.0
    %509 = vmatprep.subr.mxu0 0.0
    %510 = vmatpush1.msra.mxu0 0.0
    %511 = vmatprep.subr.mxu0 0.0
    %512 = vmatpush1.msra.mxu0 0.0
    %513 = vmatprep.subr.mxu0 0.0
    %514 = vmatpush1.msra.mxu0 0.0
    %515 = vmatprep.subr.mxu0 0.0
    %516 = vmatpush1.msra.mxu0 0.0
    %517 = vmatprep.subr.mxu0 0.0
    %518 = vmatpush1.msra.mxu0 0.0
    %519 = vmatprep.subr.mxu0 0.0
    %520 = vmatpush1.msra.mxu0 0.0
    %521 = vmatprep.subr.mxu0 0.0
    %522 = vmatpush1.msra.mxu0 0.0
    %523 = vmatprep.subr.mxu0 0.0
    %524 = vmatpush1.msra.mxu0 0.0
    %525 = vmatprep.subr.mxu0 0.0
    %526 = vmatpush1.msra.mxu0 0.0
    %527 = vmatprep.subr.mxu0 0.0
    %528 = vmatpush1.msra.mxu0 0.0
    %529 = vmatprep.subr.mxu0 0.0
    %530 = vmatpush1.msra.mxu0 %v44
    %531 = vmatprep.subr.mxu0 0.0
    %532 = vmatpush1.msra.mxu0 %v43
    %533 = vmatprep.subr.mxu0 0.0
    %534 = vmatpush1.msra.mxu0 %v42
    %535 = vmatprep.subr.mxu0 0.0
    %536 = vmatpush1.msra.mxu0 %v41
    %537 = vmatprep.subr.mxu0 0.0
    %538 = vmatpush2.msra.mxu0 0.0
    %539 = vmatprep.subr.mxu0 0.0
    %540 = vmatpush2.msra.mxu0 0.0
    %541 = vmatprep.subr.mxu0 0.0
    %542 = vmatpush2.msra.mxu0 0.0
    %543 = vmatprep.subr.mxu0 0.0
    %544 = vmatpush2.msra.mxu0 0.0
    %545 = vmatprep.subr.mxu0 0.0
    %546 = vmatpush2.msra.mxu0 0.0
    %547 = vmatprep.subr.mxu0 0.0
    %548 = vmatpush2.msra.mxu0 0.0
    %549 = vmatprep.subr.mxu0 0.0
    %550 = vmatpush2.msra.mxu0 0.0
    %551 = vmatprep.subr.mxu0 0.0
    %552 = vmatpush2.msra.mxu0 0.0
    %553 = vmatprep.subr.mxu0 0.0
    %554 = vmatpush2.msra.mxu0 0.0
    %555 = vmatprep.subr.mxu0 0.0
    %556 = vmatpush2.msra.mxu0 0.0
    %557 = vmatprep.subr.mxu0 0.0
    %558 = vmatpush2.msra.mxu0 0.0
    %559 = vmatprep.subr.mxu0 0.0
    %560 = vmatpush2.msra.mxu0 0.0
    %561 = vmatprep.subr.mxu0 0.0
    %562 = vmatpush2.msra.mxu0 0.0
    %563 = vmatprep.subr.mxu0 0.0
    %564 = vmatpush2.msra.mxu0 0.0
    %565 = vmatprep.subr.mxu0 0.0
    %566 = vmatpush2.msra.mxu0 0.0
    %567 = vmatprep.subr.mxu0 0.0
    %568 = vmatpush2.msra.mxu0 0.0
    %569 = vmatprep.mubr.f32.mxu0 0.0
    %570 = vmatmul.mubr.f32.gmra.mxu0 %v503
    %v571 = vpop.f32.mrf.mxu0
    %v572 = vadd.f32 0.0, %v571
    %v573 = vpop.f32.mrf.mxu0
    %574 = vdwg.mxu0
    %v576 = vrot.slane %v572, 5
    %v578 = vadd.f32 %v183, %v576
    %v579 = vtanh.pop %v578
    %v580 = vmul.f32 %v58, %v579
    %v581 = vadd.f32 %v580, %v59
    %v583 = vrot.slane %v487, 7
    %v585 = vmul.f32 %v581, %v583
    %587 = vrot.lane.b32.xlu0 %v581, 64
    %v588 = vpop.permute.xlu0 %587
    %v590 = vmul.f32 %v581, %v588
    %592 = vrot.lane.b32.xlu0 %v590, 32
    %v593 = vpop.permute.xlu0 %592
    %v595 = vadd.f32 %v585, %v593
    %v596 = vtanh.pop %v595
    %598 = vrot.lane.b32.xlu0 %v596, 64
    %v599 = vpop.permute.xlu0 %598
    %v601 = vmul.f32 %v581, %v599
    %603 = vrot.lane.b32.xlu0 %v601, 32
    %v604 = vpop.permute.xlu0 %603
    %vm606 = vcmask 257027
    %607 = vst.msk [vmem:[#allocation2] sm:$0x8] %vm606, %v604
    %v608 = vrot.slane %v601, 3
    %609 = vrot.lane.b32.xlu0 %v608, 32
    %v610 = vpop.permute.xlu0 %609
    %v611 = vsel %vm186, %v610, 0
    %613 = vmatprep.subr.mxu0 0.0
    %614 = vmatpush1.msra.mxu0 0.0
    %615 = vmatprep.subr.mxu0 0.0
    %616 = vmatpush1.msra.mxu0 0.0
    %617 = vmatprep.subr.mxu0 0.0
    %618 = vmatpush1.msra.mxu0 0.0
    %619 = vmatprep.subr.mxu0 0.0
    %620 = vmatpush1.msra.mxu0 0.0
    %621 = vmatprep.subr.mxu0 0.0
    %622 = vmatpush1.msra.mxu0 0.0
    %623 = vmatprep.subr.mxu0 0.0
    %624 = vmatpush1.msra.mxu0 0.0
    %625 = vmatprep.subr.mxu0 0.0
    %626 = vmatpush1.msra.mxu0 0.0
    %627 = vmatprep.subr.mxu0 0.0
    %628 = vmatpush1.msra.mxu0 0.0
    %629 = vmatprep.subr.mxu0 0.0
    %630 = vmatpush1.msra.mxu0 0.0
    %631 = vmatprep.subr.mxu0 0.0
    %632 = vmatpush1.msra.mxu0 0.0
    %633 = vmatprep.subr.mxu0 0.0
    %634 = vmatpush1.msra.mxu0 0.0
    %635 = vmatprep.subr.mxu0 0.0
    %636 = vmatpush1.msra.mxu0 0.0
    %637 = vmatprep.subr.mxu0 0.0
    %638 = vmatpush1.msra.mxu0 %v44
    %639 = vmatprep.subr.mxu0 0.0
    %640 = vmatpush1.msra.mxu0 %v43
    %641 = vmatprep.subr.mxu0 0.0
    %642 = vmatpush1.msra.mxu0 %v42
    %643 = vmatprep.subr.mxu0 0.0
    %644 = vmatpush1.msra.mxu0 %v41
    %645 = vmatprep.subr.mxu0 0.0
    %646 = vmatpush2.msra.mxu0 0.0
    %647 = vmatprep.subr.mxu0 0.0
    %648 = vmatpush2.msra.mxu0 0.0
    %649 = vmatprep.subr.mxu0 0.0
    %650 = vmatpush2.msra.mxu0 0.0
    %651 = vmatprep.subr.mxu0 0.0
    %652 = vmatpush2.msra.mxu0 0.0
    %653 = vmatprep.subr.mxu0 0.0
    %654 = vmatpush2.msra.mxu0 0.0
    %655 = vmatprep.subr.mxu0 0.0
    %656 = vmatpush2.msra.mxu0 0.0
    %657 = vmatprep.subr.mxu0 0.0
    %658 = vmatpush2.msra.mxu0 0.0
    %659 = vmatprep.subr.mxu0 0.0
    %660 = vmatpush2.msra.mxu0 0.0
    %661 = vmatprep.subr.mxu0 0.0
    %662 = vmatpush2.msra.mxu0 0.0
    %663 = vmatprep.subr.mxu0 0.0
    %664 = vmatpush2.msra.mxu0 0.0
    %665 = vmatprep.subr.mxu0 0.0
    %666 = vmatpush2.msra.mxu0 0.0
    %667 = vmatprep.subr.mxu0 0.0
    %668 = vmatpush2.msra.mxu0 0.0
    %669 = vmatprep.subr.mxu0 0.0
    %670 = vmatpush2.msra.mxu0 0.0
    %671 = vmatprep.subr.mxu0 0.0
    %672 = vmatpush2.msra.mxu0 0.0
    %673 = vmatprep.subr.mxu0 0.0
    %674 = vmatpush2.msra.mxu0 0.0
    %675 = vmatprep.subr.mxu0 0.0
    %676 = vmatpush2.msra.mxu0 0.0
    %677 = vmatprep.mubr.f32.mxu0 0.0
    %678 = vmatmul.mubr.f32.gmra.mxu0 %v611
    %v679 = vpop.f32.mrf.mxu0
    %v680 = vadd.f32 0.0, %v679
    %v681 = vpop.f32.mrf.mxu0
    %682 = vdwg.mxu0
    %v684 = vrot.slane %v680, 4
    %v686 = vadd.f32 %v183, %v684
    %v687 = vtanh.pop %v686
    %v688 = vmul.f32 %v58, %v687
    %v689 = vadd.f32 %v688, %v59
    %v691 = vrot.slane %v595, 7
    %v693 = vmul.f32 %v689, %v691
    %695 = vrot.lane.b32.xlu0 %v689, 64
    %v696 = vpop.permute.xlu0 %695
    %v698 = vmul.f32 %v689, %v696
    %700 = vrot.lane.b32.xlu0 %v698, 32
    %v701 = vpop.permute.xlu0 %700
    %v703 = vadd.f32 %v693, %v701
    %v704 = vtanh.pop %v703
    %706 = vrot.lane.b32.xlu0 %v704, 64
    %v707 = vpop.permute.xlu0 %706
    %v709 = vmul.f32 %v689, %v707
    %711 = vrot.lane.b32.xlu0 %v709, 32
    %v712 = vpop.permute.xlu0 %711
    %vm714 = vcmask 258052
    %715 = vst.msk [vmem:[#allocation2] sm:$0x10] %vm714, %v712
    %v716 = vrot.slane %v709, 4
    %717 = vrot.lane.b32.xlu0 %v716, 32
    %v718 = vpop.permute.xlu0 %717
    %v719 = vsel %vm186, %v718, 0
    %721 = vmatprep.subr.mxu0 0.0
    %722 = vmatpush1.msra.mxu0 0.0
    %723 = vmatprep.subr.mxu0 0.0
    %724 = vmatpush1.msra.mxu0 0.0
    %725 = vmatprep.subr.mxu0 0.0
    %726 = vmatpush1.msra.mxu0 0.0
    %727 = vmatprep.subr.mxu0 0.0
    %728 = vmatpush1.msra.mxu0 0.0
    %729 = vmatprep.subr.mxu0 0.0
    %730 = vmatpush1.msra.mxu0 0.0
    %731 = vmatprep.subr.mxu0 0.0
    %732 = vmatpush1.msra.mxu0 0.0
    %733 = vmatprep.subr.mxu0 0.0
    %734 = vmatpush1.msra.mxu0 0.0
    %735 = vmatprep.subr.mxu0 0.0
    %736 = vmatpush1.msra.mxu0 0.0
    %737 = vmatprep.subr.mxu0 0.0
    %738 = vmatpush1.msra.mxu0 0.0
    %739 = vmatprep.subr.mxu0 0.0
    %740 = vmatpush1.msra.mxu0 0.0
    %741 = vmatprep.subr.mxu0 0.0
    %742 = vmatpush1.msra.mxu0 0.0
    %743 = vmatprep.subr.mxu0 0.0
    %744 = vmatpush1.msra.mxu0 0.0
    %745 = vmatprep.subr.mxu0 0.0
    %746 = vmatpush1.msra.mxu0 %v44
    %747 = vmatprep.subr.mxu0 0.0
    %748 = vmatpush1.msra.mxu0 %v43
    %749 = vmatprep.subr.mxu0 0.0
    %750 = vmatpush1.msra.mxu0 %v42
    %751 = vmatprep.subr.mxu0 0.0
    %752 = vmatpush1.msra.mxu0 %v41
    %753 = vmatprep.subr.mxu0 0.0
    %754 = vmatpush2.msra.mxu0 0.0
    %755 = vmatprep.subr.mxu0 0.0
    %756 = vmatpush2.msra.mxu0 0.0
    %757 = vmatprep.subr.mxu0 0.0
    %758 = vmatpush2.msra.mxu0 0.0
    %759 = vmatprep.subr.mxu0 0.0
    %760 = vmatpush2.msra.mxu0 0.0
    %761 = vmatprep.subr.mxu0 0.0
    %762 = vmatpush2.msra.mxu0 0.0
    %763 = vmatprep.subr.mxu0 0.0
    %764 = vmatpush2.msra.mxu0 0.0
    %765 = vmatprep.subr.mxu0 0.0
    %766 = vmatpush2.msra.mxu0 0.0
    %767 = vmatprep.subr.mxu0 0.0
    %768 = vmatpush2.msra.mxu0 0.0
    %769 = vmatprep.subr.mxu0 0.0
    %770 = vmatpush2.msra.mxu0 0.0
    %771 = vmatprep.subr.mxu0 0.0
    %772 = vmatpush2.msra.mxu0 0.0
    %773 = vmatprep.subr.mxu0 0.0
    %774 = vmatpush2.msra.mxu0 0.0
    %775 = vmatprep.subr.mxu0 0.0
    %776 = vmatpush2.msra.mxu0 0.0
    %777 = vmatprep.subr.mxu0 0.0
    %778 = vmatpush2.msra.mxu0 0.0
    %779 = vmatprep.subr.mxu0 0.0
    %780 = vmatpush2.msra.mxu0 0.0
    %781 = vmatprep.subr.mxu0 0.0
    %782 = vmatpush2.msra.mxu0 0.0
    %783 = vmatprep.subr.mxu0 0.0
    %784 = vmatpush2.msra.mxu0 0.0
    %785 = vmatprep.mubr.f32.mxu0 0.0
    %786 = vmatmul.mubr.f32.gmra.mxu0 %v719
    %v787 = vpop.f32.mrf.mxu0
    %v788 = vadd.f32 0.0, %v787
    %v789 = vpop.f32.mrf.mxu0
    %790 = vdwg.mxu0
    %v792 = vrot.slane %v788, 3
    %v794 = vadd.f32 %v183, %v792
    %v795 = vtanh.pop %v794
    %v796 = vmul.f32 %v58, %v795
    %v797 = vadd.f32 %v796, %v59
    %v799 = vrot.slane %v703, 7
    %v801 = vmul.f32 %v797, %v799
    %803 = vrot.lane.b32.xlu0 %v797, 64
    %v804 = vpop.permute.xlu0 %803
    %v806 = vmul.f32 %v797, %v804
    %808 = vrot.lane.b32.xlu0 %v806, 32
    %v809 = vpop.permute.xlu0 %808
    %v811 = vadd.f32 %v801, %v809
    %v812 = vtanh.pop %v811
    %814 = vrot.lane.b32.xlu0 %v812, 64
    %v815 = vpop.permute.xlu0 %814
    %v817 = vmul.f32 %v797, %v815
    %819 = vrot.lane.b32.xlu0 %v817, 32
    %v820 = vpop.permute.xlu0 %819
    %vm822 = vcmask 259077
    %823 = vst.msk [vmem:[#allocation2] sm:$0x20] %vm822, %v820
    %v824 = vrot.slane %v817, 5
    %825 = vrot.lane.b32.xlu0 %v824, 32
    %v826 = vpop.permute.xlu0 %825
    %v827 = vsel %vm186, %v826, 0
    %829 = vmatprep.subr.mxu0 0.0
    %830 = vmatpush1.msra.mxu0 0.0
    %831 = vmatprep.subr.mxu0 0.0
    %832 = vmatpush1.msra.mxu0 0.0
    %833 = vmatprep.subr.mxu0 0.0
    %834 = vmatpush1.msra.mxu0 0.0
    %835 = vmatprep.subr.mxu0 0.0
    %836 = vmatpush1.msra.mxu0 0.0
    %837 = vmatprep.subr.mxu0 0.0
    %838 = vmatpush1.msra.mxu0 0.0
    %839 = vmatprep.subr.mxu0 0.0
    %840 = vmatpush1.msra.mxu0 0.0
    %841 = vmatprep.subr.mxu0 0.0
    %842 = vmatpush1.msra.mxu0 0.0
    %843 = vmatprep.subr.mxu0 0.0
    %844 = vmatpush1.msra.mxu0 0.0
    %845 = vmatprep.subr.mxu0 0.0
    %846 = vmatpush1.msra.mxu0 0.0
    %847 = vmatprep.subr.mxu0 0.0
    %848 = vmatpush1.msra.mxu0 0.0
    %849 = vmatprep.subr.mxu0 0.0
    %850 = vmatpush1.msra.mxu0 0.0
    %851 = vmatprep.subr.mxu0 0.0
    %852 = vmatpush1.msra.mxu0 0.0
    %853 = vmatprep.subr.mxu0 0.0
    %854 = vmatpush1.msra.mxu0 %v44
    %855 = vmatprep.subr.mxu0 0.0
    %856 = vmatpush1.msra.mxu0 %v43
    %857 = vmatprep.subr.mxu0 0.0
    %858 = vmatpush1.msra.mxu0 %v42
    %859 = vmatprep.subr.mxu0 0.0
    %860 = vmatpush1.msra.mxu0 %v41
    %861 = vmatprep.subr.mxu0 0.0
    %862 = vmatpush2.msra.mxu0 0.0
    %863 = vmatprep.subr.mxu0 0.0
    %864 = vmatpush2.msra.mxu0 0.0
    %865 = vmatprep.subr.mxu0 0.0
    %866 = vmatpush2.msra.mxu0 0.0
    %867 = vmatprep.subr.mxu0 0.0
    %868 = vmatpush2.msra.mxu0 0.0
    %869 = vmatprep.subr.mxu0 0.0
    %870 = vmatpush2.msra.mxu0 0.0
    %871 = vmatprep.subr.mxu0 0.0
    %872 = vmatpush2.msra.mxu0 0.0
    %873 = vmatprep.subr.mxu0 0.0
    %874 = vmatpush2.msra.mxu0 0.0
    %875 = vmatprep.subr.mxu0 0.0
    %876 = vmatpush2.msra.mxu0 0.0
    %877 = vmatprep.subr.mxu0 0.0
    %878 = vmatpush2.msra.mxu0 0.0
    %879 = vmatprep.subr.mxu0 0.0
    %880 = vmatpush2.msra.mxu0 0.0
    %881 = vmatprep.subr.mxu0 0.0
    %882 = vmatpush2.msra.mxu0 0.0
    %883 = vmatprep.subr.mxu0 0.0
    %884 = vmatpush2.msra.mxu0 0.0
    %885 = vmatprep.subr.mxu0 0.0
    %886 = vmatpush2.msra.mxu0 0.0
    %887 = vmatprep.subr.mxu0 0.0
    %888 = vmatpush2.msra.mxu0 0.0
    %889 = vmatprep.subr.mxu0 0.0
    %890 = vmatpush2.msra.mxu0 0.0
    %891 = vmatprep.subr.mxu0 0.0
    %892 = vmatpush2.msra.mxu0 0.0
    %893 = vmatprep.mubr.f32.mxu0 0.0
    %894 = vmatmul.mubr.f32.gmra.mxu0 %v827
    %v895 = vpop.f32.mrf.mxu0
    %v896 = vadd.f32 0.0, %v895
    %v897 = vpop.f32.mrf.mxu0
    %898 = vdwg.mxu0
    %v900 = vrot.slane %v896, 2
    %v902 = vadd.f32 %v183, %v900
    %v903 = vtanh.pop %v902
    %v904 = vmul.f32 %v58, %v903
    %v905 = vadd.f32 %v904, %v59
    %v907 = vrot.slane %v811, 7
    %v909 = vmul.f32 %v905, %v907
    %911 = vrot.lane.b32.xlu0 %v905, 64
    %v912 = vpop.permute.xlu0 %911
    %v914 = vmul.f32 %v905, %v912
    %916 = vrot.lane.b32.xlu0 %v914, 32
    %v917 = vpop.permute.xlu0 %916
    %v919 = vadd.f32 %v909, %v917
    %v920 = vtanh.pop %v919
    %922 = vrot.lane.b32.xlu0 %v920, 64
    %v923 = vpop.permute.xlu0 %922
    %v925 = vmul.f32 %v905, %v923
    %927 = vrot.lane.b32.xlu0 %v925, 32
    %v928 = vpop.permute.xlu0 %927
    %vm930 = vcmask 260102
    %931 = vst.msk [vmem:[#allocation2] sm:$0x40] %vm930, %v928
    %v932 = vrot.slane %v925, 6
    %933 = vrot.lane.b32.xlu0 %v932, 32
    %v934 = vpop.permute.xlu0 %933
    %v935 = vsel %vm186, %v934, 0
    %937 = vmatprep.subr.mxu0 0.0
    %938 = vmatpush1.msra.mxu0 0.0
    %939 = vmatprep.subr.mxu0 0.0
    %940 = vmatpush1.msra.mxu0 0.0
    %941 = vmatprep.subr.mxu0 0.0
    %942 = vmatpush1.msra.mxu0 0.0
    %943 = vmatprep.subr.mxu0 0.0
    %944 = vmatpush1.msra.mxu0 0.0
    %945 = vmatprep.subr.mxu0 0.0
    %946 = vmatpush1.msra.mxu0 0.0
    %947 = vmatprep.subr.mxu0 0.0
    %948 = vmatpush1.msra.mxu0 0.0
    %949 = vmatprep.subr.mxu0 0.0
    %950 = vmatpush1.msra.mxu0 0.0
    %951 = vmatprep.subr.mxu0 0.0
    %952 = vmatpush1.msra.mxu0 0.0
    %953 = vmatprep.subr.mxu0 0.0
    %954 = vmatpush1.msra.mxu0 0.0
    %955 = vmatprep.subr.mxu0 0.0
    %956 = vmatpush1.msra.mxu0 0.0
    %957 = vmatprep.subr.mxu0 0.0
    %958 = vmatpush1.msra.mxu0 0.0
    %959 = vmatprep.subr.mxu0 0.0
    %960 = vmatpush1.msra.mxu0 0.0
    %961 = vmatprep.subr.mxu0 0.0
    %962 = vmatpush1.msra.mxu0 %v44
    %963 = vmatprep.subr.mxu0 0.0
    %964 = vmatpush1.msra.mxu0 %v43
    %965 = vmatprep.subr.mxu0 0.0
    %966 = vmatpush1.msra.mxu0 %v42
    %967 = vmatprep.subr.mxu0 0.0
    %968 = vmatpush1.msra.mxu0 %v41
    %969 = vmatprep.subr.mxu0 0.0
    %970 = vmatpush2.msra.mxu0 0.0
    %971 = vmatprep.subr.mxu0 0.0
    %972 = vmatpush2.msra.mxu0 0.0
    %973 = vmatprep.subr.mxu0 0.0
    %974 = vmatpush2.msra.mxu0 0.0
    %975 = vmatprep.subr.mxu0 0.0
    %976 = vmatpush2.msra.mxu0 0.0
    %977 = vmatprep.subr.mxu0 0.0
    %978 = vmatpush2.msra.mxu0 0.0
    %979 = vmatprep.subr.mxu0 0.0
    %980 = vmatpush2.msra.mxu0 0.0
    %981 = vmatprep.subr.mxu0 0.0
    %982 = vmatpush2.msra.mxu0 0.0
    %983 = vmatprep.subr.mxu0 0.0
    %984 = vmatpush2.msra.mxu0 0.0
    %985 = vmatprep.subr.mxu0 0.0
    %986 = vmatpush2.msra.mxu0 0.0
    %987 = vmatprep.subr.mxu0 0.0
    %988 = vmatpush2.msra.mxu0 0.0
    %989 = vmatprep.subr.mxu0 0.0
    %990 = vmatpush2.msra.mxu0 0.0
    %991 = vmatprep.subr.mxu0 0.0
    %992 = vmatpush2.msra.mxu0 0.0
    %993 = vmatprep.subr.mxu0 0.0
    %994 = vmatpush2.msra.mxu0 0.0
    %995 = vmatprep.subr.mxu0 0.0
    %996 = vmatpush2.msra.mxu0 0.0
    %997 = vmatprep.subr.mxu0 0.0
    %998 = vmatpush2.msra.mxu0 0.0
    %999 = vmatprep.subr.mxu0 0.0
    %1000 = vmatpush2.msra.mxu0 0.0
    %1001 = vmatprep.mubr.f32.mxu0 0.0
    %1002 = vmatmul.mubr.f32.gmra.mxu0 %v935
    %v1003 = vpop.f32.mrf.mxu0
    %v1004 = vadd.f32 0.0, %v1003
    %v1005 = vpop.f32.mrf.mxu0
    %1006 = vdwg.mxu0
    %v1008 = vrot.slane %v1004, 1
    %v1010 = vadd.f32 %v183, %v1008
    %v1011 = vtanh.pop %v1010
    %v1012 = vmul.f32 %v58, %v1011
    %v1013 = vadd.f32 %v1012, %v59
    %v1015 = vrot.slane %v919, 7
    %v1017 = vmul.f32 %v1013, %v1015
    %1019 = vrot.lane.b32.xlu0 %v1013, 64
    %v1020 = vpop.permute.xlu0 %1019
    %v1022 = vmul.f32 %v1013, %v1020
    %1024 = vrot.lane.b32.xlu0 %v1022, 32
    %v1025 = vpop.permute.xlu0 %1024
    %v1027 = vadd.f32 %v1017, %v1025
    %v1028 = vtanh.pop %v1027
    %1030 = vrot.lane.b32.xlu0 %v1028, 64
    %v1031 = vpop.permute.xlu0 %1030
    %v1033 = vmul.f32 %v1013, %v1031
    %1035 = vrot.lane.b32.xlu0 %v1033, 32
    %v1036 = vpop.permute.xlu0 %1035
    %vm1038 = vcmask 261127
    %1039 = vst.msk [vmem:[#allocation2] sm:$0x80] %vm1038, %v1036
    %v1040 = vld [vmem:[#allocation2] sm:$0xff]
    %v1042 = vsel %vm186, %v1040, 0
    %1044 = vmatprep.subr.mxu0 0.0
    %1045 = vmatpush1.msra.mxu0 0.0
    %1046 = vmatprep.subr.mxu0 0.0
    %1047 = vmatpush1.msra.mxu0 0.0
    %1048 = vmatprep.subr.mxu0 0.0
    %1049 = vmatpush1.msra.mxu0 0.0
    %1050 = vmatprep.subr.mxu0 0.0
    %1051 = vmatpush1.msra.mxu0 0.0
    %1052 = vmatprep.subr.mxu0 0.0
    %1053 = vmatpush1.msra.mxu0 0.0
    %1054 = vmatprep.subr.mxu0 0.0
    %1055 = vmatpush1.msra.mxu0 0.0
    %1056 = vmatprep.subr.mxu0 0.0
    %1057 = vmatpush1.msra.mxu0 0.0
    %1058 = vmatprep.subr.mxu0 0.0
    %1059 = vmatpush1.msra.mxu0 0.0
    %1060 = vmatprep.subr.mxu0 0.0
    %1061 = vmatpush1.msra.mxu0 0.0
    %1062 = vmatprep.subr.mxu0 0.0
    %1063 = vmatpush1.msra.mxu0 0.0
    %1064 = vmatprep.subr.mxu0 0.0
    %1065 = vmatpush1.msra.mxu0 0.0
    %1066 = vmatprep.subr.mxu0 0.0
    %1067 = vmatpush1.msra.mxu0 0.0
    %1068 = vmatprep.subr.mxu0 0.0
    %1069 = vmatpush1.msra.mxu0 %v48
    %1070 = vmatprep.subr.mxu0 0.0
    %1071 = vmatpush1.msra.mxu0 %v47
    %1072 = vmatprep.subr.mxu0 0.0
    %1073 = vmatpush1.msra.mxu0 %v46
    %1074 = vmatprep.subr.mxu0 0.0
    %1075 = vmatpush1.msra.mxu0 %v45
    %1076 = vmatprep.subr.mxu0 0.0
    %1077 = vmatpush2.msra.mxu0 0.0
    %1078 = vmatprep.subr.mxu0 0.0
    %1079 = vmatpush2.msra.mxu0 0.0
    %1080 = vmatprep.subr.mxu0 0.0
    %1081 = vmatpush2.msra.mxu0 0.0
    %1082 = vmatprep.subr.mxu0 0.0
    %1083 = vmatpush2.msra.mxu0 0.0
    %1084 = vmatprep.subr.mxu0 0.0
    %1085 = vmatpush2.msra.mxu0 0.0
    %1086 = vmatprep.subr.mxu0 0.0
    %1087 = vmatpush2.msra.mxu0 0.0
    %1088 = vmatprep.subr.mxu0 0.0
    %1089 = vmatpush2.msra.mxu0 0.0
    %1090 = vmatprep.subr.mxu0 0.0
    %1091 = vmatpush2.msra.mxu0 0.0
    %1092 = vmatprep.subr.mxu0 0.0
    %1093 = vmatpush2.msra.mxu0 0.0
    %1094 = vmatprep.subr.mxu0 0.0
    %1095 = vmatpush2.msra.mxu0 0.0
    %1096 = vmatprep.subr.mxu0 0.0
    %1097 = vmatpush2.msra.mxu0 0.0
    %1098 = vmatprep.subr.mxu0 0.0
    %1099 = vmatpush2.msra.mxu0 0.0
    %1100 = vmatprep.subr.mxu0 0.0
    %1101 = vmatpush2.msra.mxu0 0.0
    %1102 = vmatprep.subr.mxu0 0.0
    %1103 = vmatpush2.msra.mxu0 0.0
    %1104 = vmatprep.subr.mxu0 0.0
    %1105 = vmatpush2.msra.mxu0 0.0
    %1106 = vmatprep.subr.mxu0 0.0
    %1107 = vmatpush2.msra.mxu0 0.0
    %1108 = vmatprep.mubr.f32.mxu0 0.0
    %1109 = vmatmul.mubr.f32.gmra.mxu0 %v1042
    %v1110 = vpop.f32.mrf.mxu0
    %v1111 = vadd.f32 0.0, %v1110
    %v1112 = vpop.f32.mrf.mxu0
    %1113 = vdwg.mxu0
    %v1114 = vcvt.s32.f32 %v54
    %vm1115 = vcmp.eq.s32.totalorder %v61, %v54
    %vm1116 = vcmp.eq.s32.totalorder %v54, 3
    %v1117 = vsel %vm1116, 0.0, -10000.0
    %v1119 = vrot.slane %v1111, 7
    %1120 = vrot.lane.b32.xlu0 %v1119, 123
    %v1121 = vpop.permute.xlu0 %1120
    %v1123 = vadd.f32 %v1111, %v1121
    %v1124 = vadd.f32 %v1123, %v52
    %v1125 = vadd.f32 %v49, %v1117
    %vm1126 = vcmask 36864
    %v1127 = vsel %vm1126, %v1125, -inf
    %1128 = vmax.xlane.f32.xlu0 %v1127
    %v1129 = vpop.xlane.xlu0 %1128
    %v1130 = vsel %vm1115, %v1129, 0.0
    %v1131 = vsel %vm1126, %v1130, 0.0
    %v1132 = vrot.slane %v1131, 4
    %v1133 = vadd.f32 %v1131, %v1132
    %v1134 = vrot.slane %v1133, 2
    %v1135 = vadd.f32 %v1133, %v1134
    %v1136 = vrot.slane %v1135, 1
    %v1137 = vadd.f32 %v1135, %v1136
    %v1138 = vadd.f32 %v1137, %v1124
    %v1139 = vrot.slane %v1111, 5
    %1140 = vrot.lane.b32.xlu0 %v1139, 123
    %v1141 = vpop.permute.xlu0 %1140
    %v1143 = vadd.f32 %v1111, %v1141
    %v1145 = vrot.slane %v52, 7
    %v1147 = vadd.f32 %v1143, %v1145
    %v1148 = vlaneseq
    %v1149 = vshrl.u32 %v1148, 7
    %v1150 = vsub.s32 0, %v1149
    %v1151 = vrot.slane %v1138, %v1150
    %v1152 = vadd.f32 %v49, %v1151
    %v1153 = vsel %vm1126, %v1152, -inf
    %1154 = vmax.xlane.f32.xlu0 %v1153
    %v1155 = vpop.xlane.xlu0 %1154
    %vm1156 = vcmp.eq.f32.partialorder %v1152, %v1155
    %v1157 = vsel %vm1156, %v1114, 1e+09
    %v1158 = vsel %vm1126, %v1157, inf
    %1159 = vmin.xlane.f32.xlu0 %v1158
    %v1160 = vpop.xlane.xlu0 %1159
    %v1161 = vsel %vm1115, %v1155, 0.0
    %v1162 = vsel %vm1126, %v1161, 0.0
    %v1163 = vrot.slane %v1162, 4
    %v1164 = vadd.f32 %v1162, %v1163
    %v1165 = vrot.slane %v1164, 2
    %v1166 = vadd.f32 %v1164, %v1165
    %v1167 = vrot.slane %v1166, 1
    %v1168 = vadd.f32 %v1166, %v1167
    %v1169 = vsel %vm1115, %v1160, 0.0
    %v1170 = vsel %vm1126, %v1169, 0.0
    %v1171 = vrot.slane %v1170, 4
    %v1172 = vadd.f32 %v1170, %v1171
    %v1173 = vrot.slane %v1172, 2
    %v1174 = vadd.f32 %v1172, %v1173
    %v1175 = vrot.slane %v1174, 1
    %v1176 = vadd.f32 %v1174, %v1175
    %v1177 = vcvt.f32.s32.to.zero.pseudo %v1176
    %v1178 = vadd.f32 %v1168, %v1147
    %v1179 = vrot.slane %v1111, 3
    %1180 = vrot.lane.b32.xlu0 %v1179, 123
    %v1181 = vpop.permute.xlu0 %1180
    %v1183 = vadd.f32 %v1111, %v1181
    %v1184 = vrot.slane %v52, 6
    %v1186 = vadd.f32 %v1183, %v1184
    %v1187 = vlaneseq
    %v1188 = vshrl.u32 %v1187, 7
    %v1189 = vsub.s32 1, %v1188
    %v1190 = vrot.slane %v1178, %v1189
    %v1191 = vadd.f32 %v49, %v1190
    %v1192 = vsel %vm1126, %v1191, -inf
    %1193 = vmax.xlane.f32.xlu0 %v1192
    %v1194 = vpop.xlane.xlu0 %1193
    %vm1195 = vcmp.eq.f32.partialorder %v1191, %v1194
    %v1196 = vsel %vm1195, %v1114, 1e+09
    %v1197 = vsel %vm1126, %v1196, inf
    %1198 = vmin.xlane.f32.xlu0 %v1197
    %v1199 = vpop.xlane.xlu0 %1198
    %v1200 = vsel %vm1115, %v1194, 0.0
    %v1201 = vsel %vm1126, %v1200, 0.0
    %v1202 = vrot.slane %v1201, 4
    %v1203 = vadd.f32 %v1201, %v1202
    %v1204 = vrot.slane %v1203, 2
    %v1205 = vadd.f32 %v1203, %v1204
    %v1206 = vrot.slane %v1205, 1
    %v1207 = vadd.f32 %v1205, %v1206
    %v1208 = vsel %vm1115, %v1199, 0.0
    %v1209 = vsel %vm1126, %v1208, 0.0
    %v1210 = vrot.slane %v1209, 4
    %v1211 = vadd.f32 %v1209, %v1210
    %v1212 = vrot.slane %v1211, 2
    %v1213 = vadd.f32 %v1211, %v1212
    %v1214 = vrot.slane %v1213, 1
    %v1215 = vadd.f32 %v1213, %v1214
    %v1216 = vcvt.f32.s32.to.zero.pseudo %v1215
    %v1217 = vadd.f32 %v1207, %v1186
    %v1218 = vrot.slane %v1111, 1
    %1219 = vrot.lane.b32.xlu0 %v1218, 123
    %v1220 = vpop.permute.xlu0 %1219
    %v1222 = vadd.f32 %v1111, %v1220
    %v1223 = vrot.slane %v52, 5
    %v1225 = vadd.f32 %v1222, %v1223
    %v1226 = vlaneseq
    %v1227 = vshrl.u32 %v1226, 7
    %v1228 = vsub.s32 2, %v1227
    %v1229 = vrot.slane %v1217, %v1228
    %v1230 = vadd.f32 %v49, %v1229
    %v1231 = vsel %vm1126, %v1230, -inf
    %1232 = vmax.xlane.f32.xlu0 %v1231
    %v1233 = vpop.xlane.xlu0 %1232
    %vm1234 = vcmp.eq.f32.partialorder %v1230, %v1233
    %v1235 = vsel %vm1234, %v1114, 1e+09
    %v1236 = vsel %vm1126, %v1235, inf
    %1237 = vmin.xlane.f32.xlu0 %v1236
    %v1238 = vpop.xlane.xlu0 %1237
    %v1239 = vsel %vm1115, %v1233, 0.0
    %v1240 = vsel %vm1126, %v1239, 0.0
    %v1241 = vrot.slane %v1240, 4
    %v1242 = vadd.f32 %v1240, %v1241
    %v1243 = vrot.slane %v1242, 2
    %v1244 = vadd.f32 %v1242, %v1243
    %v1245 = vrot.slane %v1244, 1
    %v1246 = vadd.f32 %v1244, %v1245
    %v1247 = vsel %vm1115, %v1238, 0.0
    %v1248 = vsel %vm1126, %v1247, 0.0
    %v1249 = vrot.slane %v1248, 4
    %v1250 = vadd.f32 %v1248, %v1249
    %v1251 = vrot.slane %v1250, 2
    %v1252 = vadd.f32 %v1250, %v1251
    %v1253 = vrot.slane %v1252, 1
    %v1254 = vadd.f32 %v1252, %v1253
    %v1255 = vcvt.f32.s32.to.zero.pseudo %v1254
    %v1256 = vadd.f32 %v1246, %v1225
    %v1257 = vrot.slane %v52, 4
    %v1259 = vadd.f32 %v1123, %v1257
    %v1260 = vlaneseq
    %v1261 = vshrl.u32 %v1260, 7
    %v1262 = vsub.s32 3, %v1261
    %v1263 = vrot.slane %v1256, %v1262
    %v1264 = vadd.f32 %v49, %v1263
    %v1265 = vsel %vm1126, %v1264, -inf
    %1266 = vmax.xlane.f32.xlu0 %v1265
    %v1267 = vpop.xlane.xlu0 %1266
    %vm1268 = vcmp.eq.f32.partialorder %v1264, %v1267
    %v1269 = vsel %vm1268, %v1114, 1e+09
    %v1270 = vsel %vm1126, %v1269, inf
    %1271 = vmin.xlane.f32.xlu0 %v1270
    %v1272 = vpop.xlane.xlu0 %1271
    %v1273 = vsel %vm1115, %v1267, 0.0
    %v1274 = vsel %vm1126, %v1273, 0.0
    %v1275 = vrot.slane %v1274, 4
    %v1276 = vadd.f32 %v1274, %v1275
    %v1277 = vrot.slane %v1276, 2
    %v1278 = vadd.f32 %v1276, %v1277
    %v1279 = vrot.slane %v1278, 1
    %v1280 = vadd.f32 %v1278, %v1279
    %v1281 = vsel %vm1115, %v1272, 0.0
    %v1282 = vsel %vm1126, %v1281, 0.0
    %v1283 = vrot.slane %v1282, 4
    %v1284 = vadd.f32 %v1282, %v1283
    %v1285 = vrot.slane %v1284, 2
    %v1286 = vadd.f32 %v1284, %v1285
    %v1287 = vrot.slane %v1286, 1
    %v1288 = vadd.f32 %v1286, %v1287
    %v1289 = vcvt.f32.s32.to.zero.pseudo %v1288
    %v1290 = vadd.f32 %v1280, %v1259
    %v1291 = vrot.slane %v52, 3
    %v1293 = vadd.f32 %v1143, %v1291
    %v1294 = vlaneseq
    %v1295 = vshrl.u32 %v1294, 7
    %v1296 = vsub.s32 4, %v1295
    %v1297 = vrot.slane %v1290, %v1296
    %v1298 = vadd.f32 %v49, %v1297
    %v1299 = vsel %vm1126, %v1298, -inf
    %1300 = vmax.xlane.f32.xlu0 %v1299
    %v1301 = vpop.xlane.xlu0 %1300
    %vm1302 = vcmp.eq.f32.partialorder %v1298, %v1301
    %v1303 = vsel %vm1302, %v1114, 1e+09
    %v1304 = vsel %vm1126, %v1303, inf
    %1305 = vmin.xlane.f32.xlu0 %v1304
    %v1306 = vpop.xlane.xlu0 %1305
    %v1307 = vsel %vm1115, %v1301, 0.0
    %v1308 = vsel %vm1126, %v1307, 0.0
    %v1309 = vrot.slane %v1308, 4
    %v1310 = vadd.f32 %v1308, %v1309
    %v1311 = vrot.slane %v1310, 2
    %v1312 = vadd.f32 %v1310, %v1311
    %v1313 = vrot.slane %v1312, 1
    %v1314 = vadd.f32 %v1312, %v1313
    %v1315 = vsel %vm1115, %v1306, 0.0
    %v1316 = vsel %vm1126, %v1315, 0.0
    %v1317 = vrot.slane %v1316, 4
    %v1318 = vadd.f32 %v1316, %v1317
    %v1319 = vrot.slane %v1318, 2
    %v1320 = vadd.f32 %v1318, %v1319
    %v1321 = vrot.slane %v1320, 1
    %v1322 = vadd.f32 %v1320, %v1321
    %v1323 = vcvt.f32.s32.to.zero.pseudo %v1322
    %v1324 = vadd.f32 %v1314, %v1293
    %v1325 = vrot.slane %v52, 2
    %v1327 = vadd.f32 %v1183, %v1325
    %v1328 = vlaneseq
    %v1329 = vshrl.u32 %v1328, 7
    %v1330 = vsub.s32 5, %v1329
    %v1331 = vrot.slane %v1324, %v1330
    %v1332 = vadd.f32 %v49, %v1331
    %v1333 = vsel %vm1126, %v1332, -inf
    %1334 = vmax.xlane.f32.xlu0 %v1333
    %v1335 = vpop.xlane.xlu0 %1334
    %vm1336 = vcmp.eq.f32.partialorder %v1332, %v1335
    %v1337 = vsel %vm1336, %v1114, 1e+09
    %v1338 = vsel %vm1126, %v1337, inf
    %1339 = vmin.xlane.f32.xlu0 %v1338
    %v1340 = vpop.xlane.xlu0 %1339
    %v1341 = vsel %vm1115, %v1335, 0.0
    %v1342 = vsel %vm1126, %v1341, 0.0
    %v1343 = vrot.slane %v1342, 4
    %v1344 = vadd.f32 %v1342, %v1343
    %v1345 = vrot.slane %v1344, 2
    %v1346 = vadd.f32 %v1344, %v1345
    %v1347 = vrot.slane %v1346, 1
    %v1348 = vadd.f32 %v1346, %v1347
    %v1349 = vsel %vm1115, %v1340, 0.0
    %v1350 = vsel %vm1126, %v1349, 0.0
    %v1351 = vrot.slane %v1350, 4
    %v1352 = vadd.f32 %v1350, %v1351
    %v1353 = vrot.slane %v1352, 2
    %v1354 = vadd.f32 %v1352, %v1353
    %v1355 = vrot.slane %v1354, 1
    %v1356 = vadd.f32 %v1354, %v1355
    %v1357 = vcvt.f32.s32.to.zero.pseudo %v1356
    %v1358 = vadd.f32 %v1348, %v1327
    %v1359 = vrot.slane %v52, 1
    %v1361 = vadd.f32 %v1222, %v1359
    %v1362 = vlaneseq
    %v1363 = vshrl.u32 %v1362, 7
    %v1364 = vsub.s32 6, %v1363
    %v1365 = vrot.slane %v1358, %v1364
    %v1366 = vadd.f32 %v49, %v1365
    %v1367 = vsel %vm1126, %v1366, -inf
    %1368 = vmax.xlane.f32.xlu0 %v1367
    %v1369 = vpop.xlane.xlu0 %1368
    %vm1370 = vcmp.eq.f32.partialorder %v1366, %v1369
    %v1371 = vsel %vm1370, %v1114, 1e+09
    %v1372 = vsel %vm1126, %v1371, inf
    %1373 = vmin.xlane.f32.xlu0 %v1372
    %v1374 = vpop.xlane.xlu0 %1373
    %v1375 = vsel %vm1115, %v1369, 0.0
    %v1376 = vsel %vm1126, %v1375, 0.0
    %v1377 = vrot.slane %v1376, 4
    %v1378 = vadd.f32 %v1376, %v1377
    %v1379 = vrot.slane %v1378, 2
    %v1380 = vadd.f32 %v1378, %v1379
    %v1381 = vrot.slane %v1380, 1
    %v1382 = vadd.f32 %v1380, %v1381
    %v1383 = vsel %vm1115, %v1374, 0.0
    %v1384 = vsel %vm1126, %v1383, 0.0
    %v1385 = vrot.slane %v1384, 4
    %v1386 = vadd.f32 %v1384, %v1385
    %v1387 = vrot.slane %v1386, 2
    %v1388 = vadd.f32 %v1386, %v1387
    %v1389 = vrot.slane %v1388, 1
    %v1390 = vadd.f32 %v1388, %v1389
    %v1391 = vcvt.f32.s32.to.zero.pseudo %v1390
    %v1392 = vadd.f32 %v1382, %v1361
    %v1394 = vrot.slane %v49, 5
    %v1396 = vadd.f32 %v1392, %v1394
    %vm1397 = vcmask 39943
    %v1398 = vsel %vm1397, %v1396, -inf
    %1399 = vmax.xlane.f32.xlu0 %v1398
    %v1400 = vpop.xlane.xlu0 %1399
    %vm1401 = vcmp.eq.f32.partialorder %v1396, %v1400
    %v1402 = vsel %vm1401, %v1114, 1e+09
    %v1403 = vsel %vm1397, %v1402, inf
    %1404 = vmin.xlane.f32.xlu0 %v1403
    %v1405 = vpop.xlane.xlu0 %1404
    %v1406 = vcvt.f32.s32.to.zero.pseudo %v1405
    %vm1407 = vcmp.eq.s32.totalorder %v54, 0
    %v1408 = vsel %vm1407, %v1400, 0.0
    %vm1409 = vcmp.eq.s32.totalorder %v54, 8
    %v1410 = vcvt.s32.f32 %v1406
    %v1411 = vsel %vm1409, %v1410, %v1408
    %vm1412 = vcmp.eq.s32.totalorder %v54, %v1406
    %v1413 = vsel %vm1412, %v1391, 0
    %v1414 = vsel %vm1397, %v1413, 0
    %v1415 = vand.u32 %v1414, 65535
    %v1416 = vshrl.u32 %v1414, 16
    %v1417 = vcvt.s32.f32 %v1415
    %v1418 = vcvt.s32.f32 %v1416
    %1419 = vadd.xlane.f32.xlu0 %v1417
    %v1420 = vpop.xlane.xlu0 %1419
    %1421 = vadd.xlane.f32.xlu0 %v1418
    %v1422 = vpop.xlane.xlu0 %1421
    %v1423 = vcvt.f32.s32 %v1420
    %v1424 = vcvt.f32.s32 %v1422
    %v1425 = vshll.u32 %v1424, 16
    %v1426 = vadd.s32 %v1425, %v1423
    %vm1427 = vcmp.eq.s32.totalorder %v54, 7
    %v1428 = vcvt.s32.f32 %v1426
    %v1429 = vsel %vm1427, %v1428, %v1411
    %vm1430 = vcmp.eq.s32.totalorder %v54, %v1426
    %v1431 = vsel %vm1430, %v1357, 0
    %v1432 = vsel %vm1397, %v1431, 0
    %v1433 = vand.u32 %v1432, 65535
    %v1434 = vshrl.u32 %v1432, 16
    %v1435 = vcvt.s32.f32 %v1433
    %v1436 = vcvt.s32.f32 %v1434
    %1437 = vadd.xlane.f32.xlu0 %v1435
    %v1438 = vpop.xlane.xlu0 %1437
    %1439 = vadd.xlane.f32.xlu0 %v1436
    %v1440 = vpop.xlane.xlu0 %1439
    %v1441 = vcvt.f32.s32 %v1438
    %v1442 = vcvt.f32.s32 %v1440
    %v1443 = vshll.u32 %v1442, 16
    %v1444 = vadd.s32 %v1443, %v1441
    %vm1445 = vcmp.eq.s32.totalorder %v54, 6
    %v1446 = vcvt.s32.f32 %v1444
    %v1447 = vsel %vm1445, %v1446, %v1429
    %vm1448 = vcmp.eq.s32.totalorder %v54, %v1444
    %v1449 = vsel %vm1448, %v1323, 0
    %v1450 = vsel %vm1397, %v1449, 0
    %v1451 = vand.u32 %v1450, 65535
    %v1452 = vshrl.u32 %v1450, 16
    %v1453 = vcvt.s32.f32 %v1451
    %v1454 = vcvt.s32.f32 %v1452
    %1455 = vadd.xlane.f32.xlu0 %v1453
    %v1456 = vpop.xlane.xlu0 %1455
    %1457 = vadd.xlane.f32.xlu0 %v1454
    %v1458 = vpop.xlane.xlu0 %1457
    %v1459 = vcvt.f32.s32 %v1456
    %v1460 = vcvt.f32.s32 %v1458
    %v1461 = vshll.u32 %v1460, 16
    %v1462 = vadd.s32 %v1461, %v1459
    %vm1463 = vcmp.eq.s32.totalorder %v54, 5
    %v1464 = vcvt.s32.f32 %v1462
    %v1465 = vsel %vm1463, %v1464, %v1447
    %vm1466 = vcmp.eq.s32.totalorder %v54, %v1462
    %v1467 = vsel %vm1466, %v1289, 0
    %v1468 = vsel %vm1397, %v1467, 0
    %v1469 = vand.u32 %v1468, 65535
    %v1470 = vshrl.u32 %v1468, 16
    %v1471 = vcvt.s32.f32 %v1469
    %v1472 = vcvt.s32.f32 %v1470
    %1473 = vadd.xlane.f32.xlu0 %v1471
    %v1474 = vpop.xlane.xlu0 %1473
    %1475 = vadd.xlane.f32.xlu0 %v1472
    %v1476 = vpop.xlane.xlu0 %1475
    %v1477 = vcvt.f32.s32 %v1474
    %v1478 = vcvt.f32.s32 %v1476
    %v1479 = vshll.u32 %v1478, 16
    %v1480 = vadd.s32 %v1479, %v1477
    %vm1481 = vcmp.eq.s32.totalorder %v54, 4
    %v1482 = vcvt.s32.f32 %v1480
    %v1483 = vsel %vm1481, %v1482, %v1465
    %vm1484 = vcmp.eq.s32.totalorder %v54, %v1480
    %v1485 = vsel %vm1484, %v1255, 0
    %v1486 = vsel %vm1397, %v1485, 0
    %v1487 = vand.u32 %v1486, 65535
    %v1488 = vshrl.u32 %v1486, 16
    %v1489 = vcvt.s32.f32 %v1487
    %v1490 = vcvt.s32.f32 %v1488
    %1491 = vadd.xlane.f32.xlu0 %v1489
    %v1492 = vpop.xlane.xlu0 %1491
    %1493 = vadd.xlane.f32.xlu0 %v1490
    %v1494 = vpop.xlane.xlu0 %1493
    %v1495 = vcvt.f32.s32 %v1492
    %v1496 = vcvt.f32.s32 %v1494
    %v1497 = vshll.u32 %v1496, 16
    %v1498 = vadd.s32 %v1497, %v1495
    %v1499 = vcvt.s32.f32 %v1498
    %v1500 = vsel %vm1116, %v1499, %v1483
    %vm1501 = vcmp.eq.s32.totalorder %v54, %v1498
    %v1502 = vsel %vm1501, %v1216, 0
    %v1503 = vsel %vm1397, %v1502, 0
    %v1504 = vand.u32 %v1503, 65535
    %v1505 = vshrl.u32 %v1503, 16
    %v1506 = vcvt.s32.f32 %v1504
    %v1507 = vcvt.s32.f32 %v1505
    %1508 = vadd.xlane.f32.xlu0 %v1506
    %v1509 = vpop.xlane.xlu0 %1508
    %1510 = vadd.xlane.f32.xlu0 %v1507
    %v1511 = vpop.xlane.xlu0 %1510
    %v1512 = vcvt.f32.s32 %v1509
    %v1513 = vcvt.f32.s32 %v1511
    %v1514 = vshll.u32 %v1513, 16
    %v1515 = vadd.s32 %v1514, %v1512
    %vm1516 = vcmp.eq.s32.totalorder %v54, 2
    %v1517 = vcvt.s32.f32 %v1515
    %v1518 = vsel %vm1516, %v1517, %v1500
    %vm1519 = vcmp.eq.s32.totalorder %v54, %v1515
    %v1520 = vsel %vm1519, %v1177, 0
    %v1521 = vsel %vm1397, %v1520, 0
    %v1522 = vand.u32 %v1521, 65535
    %v1523 = vshrl.u32 %v1521, 16
    %v1524 = vcvt.s32.f32 %v1522
    %v1525 = vcvt.s32.f32 %v1523
    %1526 = vadd.xlane.f32.xlu0 %v1524
    %v1527 = vpop.xlane.xlu0 %1526
    %1528 = vadd.xlane.f32.xlu0 %v1525
    %v1529 = vpop.xlane.xlu0 %1528
    %v1530 = vcvt.f32.s32 %v1527
    %v1531 = vcvt.f32.s32 %v1529
    %v1532 = vshll.u32 %v1531, 16
    %v1533 = vadd.s32 %v1532, %v1530
    %vm1534 = vcmp.eq.s32.totalorder %v54, 1
    %v1535 = vcvt.s32.f32 %v1533
    %v1536 = vsel %vm1534, %v1535, %v1518
    %1537 = vst [vmem:[%s2 - $0x7] sm:$0x80] %v1536
    // Predicated region
    $region18: #{forward.1} parent=1 // pred_check
      _
    $region19: #{forward.1} parent=1 // pred_check_branch
      %1539 = sbr.rel (0) target = $region21
    $region20: #{forward.1} parent=1 // pred_region
      _
    $region21: #{forward.1} parent=1 // pred_fallthru
      _
    // Predicated region
    $region22: #{forward.1} parent=1 // pred_check
      _
    $region23: #{forward.1} parent=1 // pred_check_branch
      %1541 = sbr.rel (0) target = $region25
    $region24: #{forward.1} parent=1 // pred_region
      _
    $region25: #{forward.1} parent=1 // pred_fallthru
      _
    %1542 = vsyncpa [#allocation4], 1
    %1543 = vsyncpa [#allocation5], 1

</llo_original>
